<compile_context>
chip_gen: v7x
topology: tpu7x:2x2x1
jax: 0.10.0
libtpu: 0.0.40
codegen_flags: <defaults>
</compile_context>

<pallas_src>
import functools

import jax
import jax.numpy as jnp
import numpy as np
from jax.experimental import pallas as pl
from jax.experimental.pallas import tpu as pltpu

NUM_REPEATS = 3
STRIDE = 2
KERNEL_SIZE = 4
PADDING = 1


def calc_length(lengths, padding, kernel_size, stride, ceil_mode):
    """Exact port of the PyTorch calc_length (float div + ceil/floor)."""
    add_pad = padding * 2 - kernel_size
    l = (lengths.astype(jnp.float32) + add_pad) / stride + 1.0
    l = jnp.ceil(l) if ceil_mode else jnp.floor(l)
    return l.astype(jnp.int32)


def _round8(v):
    return ((v + 7) // 8) * 8


# ----------------------------------------------------------------------------
# Single fused kernel: whole downsample->upsample pipeline for one batch element
# ----------------------------------------------------------------------------
def _fused_updown_kernel(lens_ref,               # SMEM (B, 4) int32 valid lengths/level
                         x_ref,                  # (1, n_pad, C) padded input
                         wd_ref,                 # (4C, C)   im2col downsample weight
                         bd_ref,                 # (1, C)
                         wu_ref,                 # (3C, 2C)  [z_prev|z|z_next] -> [ye|yo]
                         bu_ref,                 # (1, C)
                         wm_ref,                 # (2C, C)   residual merge weight
                         bm_ref,                 # (1, C)
                         xds_ref,                # out (1, n_pad//8, C)
                         xup_ref,                # out (1, n_orig, C)
                         x_scr, h1_scr, h2_scr, z_scr, y_scr,   # VMEM scratch
                         *, n_orig, n_pad, mxu_dtype):
    b = pl.program_id(0)
    f32 = jnp.float32
    C = x_ref.shape[-1]

    # ---- hoisted: weights loaded once (already in MXU dtype), biases in f32 ----
    wd = wd_ref[...]
    wu = wu_ref[...]
    wm = wm_ref[...]
    bd = bd_ref[...].astype(f32)
    bu2 = jnp.concatenate([bu_ref[...], bu_ref[...]], axis=-1).astype(f32)   # (1, 2C)
    bm = bm_ref[...].astype(f32)

    def mxdot(a, w):
        return jnp.dot(a.astype(mxu_dtype), w, preferred_element_type=f32)

    def pad_mask(rows, valid_len):
        # True on time rows to zero out: row_index >= valid_len
        return jax.lax.broadcasted_iota(jnp.int32, (rows, 1), 0) >= valid_len

    def store_signal(scr, rows, value):
        # Layout inside a scratch buffer: row 0 = left zero pad, rows 1..rows =
        # signal, row rows+1 = right zero pad (taps never read past rows+1).
        zero_row = jnp.zeros((1, C), f32)
        scr[0:1, :] = zero_row
        scr[1:1 + rows, :] = value.astype(f32)
        scr[1 + rows:2 + rows, :] = zero_row

    L0, L1, L2, L3 = n_pad, n_pad // 2, n_pad // 4, n_pad // 8

    # ------------- downsample: 3 x (im2col conv k4 s2 p1 -> relu -> mask) -------
    store_signal(x_scr, L0, x_ref[0])

    lvl_scr = [x_scr, h1_scr, h2_scr]
    lvl_len = [L0, L1, L2]
    h = None
    for rep in range(NUM_REPEATS):
        src = lvl_scr[rep]
        T = lvl_len[rep] // 2
        # patch[t, k*C + c] = x[2t + k - 1, c]  (scratch row 2t + k, zero padded)
        patch = jnp.concatenate(
            [src[pl.ds(k, T, stride=2), :] for k in range(KERNEL_SIZE)], axis=-1)
        y = jnp.maximum(mxdot(patch, wd) + bd, 0.0)
        y = jnp.where(pad_mask(T, lens_ref[b, rep + 1]), 0.0, y)
        if rep + 1 < NUM_REPEATS:
            store_signal(lvl_scr[rep + 1], T, y)        # conv input & residual
        h = y

    xds_ref[0] = h.astype(xds_ref.dtype)

    # ------- upsample: 3 x (convT k4 s2 p1 -> relu -> [trim] -> mask -> merge) --
    store_signal(z_scr, L3, h)
    res_scr = [h2_scr, h1_scr, x_scr]
    out_rows_per_rep = [L2, L1, n_orig]
    in_rows_per_rep = [L3, L2, L1]
    len_idx = [2, 1, 0]
    z_new = None
    for rep in range(NUM_REPEATS):
        T = in_rows_per_rep[rep]
        out_rows = out_rows_per_rep[rep]
        # z[t-1] / z[t] / z[t+1] as offset slices of the zero-padded z scratch
        zp = z_scr[0:T, :]
        zc = z_scr[1:T + 1, :]
        zn = z_scr[2:T + 2, :]
        patch = jnp.concatenate([zp, zc, zn], axis=-1)              # (T, 3C)
        # y[2t] = z[t-1]@W3 + z[t]@W1 ; y[2t+1] = z[t]@W2 + z[t+1]@W0
        yeo = jnp.maximum(mxdot(patch, wu) + bu2, 0.0)              # (T, 2C)=[even|odd]
        # interleave even/odd rows with two strided stores (no MXU data movement)
        y_scr[pl.ds(0, T, stride=2), :] = yeo[:, :C]
        y_scr[pl.ds(1, T, stride=2), :] = yeo[:, C:]
        y = y_scr[0:out_rows, :]                                    # also trims pad_n
        y = jnp.where(pad_mask(out_rows, lens_ref[b, len_idx[rep]]), 0.0, y)
        res = res_scr[rep][1:1 + out_rows, :]
        # residual merge: Linear(cat([y, res], -1)) as a single K=2C matmul
        z_new = mxdot(jnp.concatenate([y, res], axis=-1), wm) + bm
        if rep + 1 < NUM_REPEATS:
            store_signal(z_scr, out_rows, z_new)

    xup_ref[0] = z_new.astype(xup_ref.dtype)


# ----------------------------------------------------------------------------
# Wrapper: pad, lengths, hoisted weight layouts, single pallas_call
# ----------------------------------------------------------------------------
def upsample_downsample_forward(x, length, params, *, use_bf16=False):
    B, n, C = x.shape
    to_div = STRIDE ** NUM_REPEATS
    pad_n = (-n) % to_div
    n_pad = n + pad_n
    assert n_pad // to_div >= 1, "sequence too short for 3 stride-2 downsamples"

    x_pad = jnp.pad(x, ((0, 0), (0, pad_n), (0, 0)))                 # padder()

    # per-level valid lengths [l0, l1, l2, l3]  (l3 == ds_lengths)
    lens_list = [length.astype(jnp.int32)]
    l = length
    for _ in range(NUM_REPEATS):
        l = calc_length(l, PADDING, KERNEL_SIZE, STRIDE, ceil_mode=True)
        lens_list.append(l)
    lens_all = jnp.stack(lens_list, axis=1).astype(jnp.int32)        # (B, 4)
    ds_lengths = lens_list[-1]

    mxu_dtype = jnp.bfloat16 if use_bf16 else jnp.float32

    # ---- hoisted weight re-layouts (once per forward, shared by every repeat) --
    # downsample im2col weight: row k*C + c_in multiplies x[2t + k - 1, c_in]
    wd_s = jnp.transpose(params["conv_ds_w"], (2, 1, 0)).reshape(KERNEL_SIZE * C, C)
    # ConvT fused weight: [z_prev | z | z_next] (3C) -> [y_even | y_odd] (2C)
    wk = [params["conv_us_w"][:, :, k] for k in range(KERNEL_SIZE)]  # each (C_in, C_out)
    zc = jnp.zeros((C, C), params["conv_us_w"].dtype)
    wu_s = jnp.concatenate([
        jnp.concatenate([wk[3], zc], axis=1),
        jnp.concatenate([wk[1], wk[2]], axis=1),
        jnp.concatenate([zc, wk[0]], axis=1),
    ], axis=0)                                                       # (3C, 2C)
    wm_s = params["merge_w"].T                                       # (2C, C)
    bd = params["conv_ds_b"].reshape(1, C)
    bu = params["conv_us_b"].reshape(1, C)
    bm = params["merge_b"].reshape(1, C)

    wd_s = wd_s.astype(mxu_dtype)
    wu_s = wu_s.astype(mxu_dtype)
    wm_s = wm_s.astype(mxu_dtype)

    t_ds = n_pad // to_div

    scratch_shapes = [
        pltpu.VMEM((_round8(n_pad + 2), C), jnp.float32),            # x_scr (lvl0 in / residual)
        pltpu.VMEM((_round8(n_pad // 2 + 2), C), jnp.float32),       # h1_scr
        pltpu.VMEM((_round8(n_pad // 4 + 2), C), jnp.float32),       # h2_scr
        pltpu.VMEM((_round8(n_pad // 2 + 2), C), jnp.float32),       # z_scr (upsample state)
        pltpu.VMEM((n_pad, C), jnp.float32),                         # y_scr (interleave)
    ]

    # Footprint is linear in n_pad; set the scoped-VMEM limit explicitly
    # (v5e defaults to 16 MiB which realistic sequence lengths would exceed).
    scratch_rows = (_round8(n_pad + 2) + 2 * _round8(n_pad // 2 + 2)
                    + _round8(n_pad // 4 + 2) + n_pad)
    est_bytes = 4 * C * (2 * (n_pad + t_ds + n) + scratch_rows + (12 * C + 6))
    vmem_limit = int(min(max(4 * est_bytes, 32 * 1024 * 1024), 100 * 1024 * 1024))

    kern = functools.partial(_fused_updown_kernel, n_orig=n, n_pad=n_pad,
                             mxu_dtype=mxu_dtype)

    x_ds, x_up = pl.pallas_call(
        kern,
        out_shape=(jax.ShapeDtypeStruct((B, t_ds, C), x.dtype),
                   jax.ShapeDtypeStruct((B, n, C), x.dtype)),
        grid_spec=pltpu.PrefetchScalarGridSpec(
            num_scalar_prefetch=1,
            grid=(B,),
            in_specs=[
                pl.BlockSpec((1, n_pad, C), lambda b, lens: (b, 0, 0)),
                pl.BlockSpec((KERNEL_SIZE * C, C), lambda b, lens: (0, 0)),
                pl.BlockSpec((1, C), lambda b, lens: (0, 0)),
                pl.BlockSpec((3 * C, 2 * C), lambda b, lens: (0, 0)),
                pl.BlockSpec((1, C), lambda b, lens: (0, 0)),
                pl.BlockSpec((2 * C, C), lambda b, lens: (0, 0)),
                pl.BlockSpec((1, C), lambda b, lens: (0, 0)),
            ],
            out_specs=(
                pl.BlockSpec((1, t_ds, C), lambda b, lens: (b, 0, 0)),
                pl.BlockSpec((1, n, C), lambda b, lens: (b, 0, 0)),
            ),
            scratch_shapes=scratch_shapes,
        ),
        compiler_params=pltpu.CompilerParams(
            dimension_semantics=("parallel",),
            vmem_limit_bytes=vmem_limit),
    )(lens_all, x_pad, wd_s, bd, wu_s, bu, wm_s, bm)

    return x_ds, ds_lengths, x_up


# ----------------------------------------------------------------------------
# Pure-JAX reference (independent formulation) for a correctness sanity check
# ----------------------------------------------------------------------------
def _reference_forward(x, length, params):
    B, n, C = x.shape
    to_div = STRIDE ** NUM_REPEATS
    pad_n = (-n) % to_div
    hp_prec = jax.lax.Precision.HIGHEST

    def conv_down(h):
        _, L, _ = h.shape
        hp = jnp.pad(h, ((0, 0), (1, 1), (0, 0)))
        T = L // 2
        out = params["conv_ds_b"][None, None, :]
        for k in range(KERNEL_SIZE):
            out = out + jnp.einsum("btc,oc->bto", hp[:, k:k + 2 * T:2, :],
                                   params["conv_ds_w"][:, :, k], precision=hp_prec)
        return out

    def conv_up(h):
        Bh, L, _ = h.shape
        full = jnp.zeros((Bh, 2 * L + 2, C), h.dtype)
        for k in range(KERNEL_SIZE):
            full = full.at[:, k:k + 2 * L:2, :].add(
                jnp.einsum("btc,co->bto", h, params["conv_us_w"][:, :, k],
                           precision=hp_prec))
        return full[:, 1:2 * L + 1, :] + params["conv_us_b"][None, None, :]

    inp_mask = jnp.arange(n)[None, :] >= length[:, None]
    masks = [inp_mask]
    residuals = [x]
    ds_lengths = length.astype(jnp.int32)
    h = jnp.pad(x, ((0, 0), (0, pad_n), (0, 0)))
    for _ in range(NUM_REPEATS):
        h = jax.nn.relu(conv_down(h))
        ds_lengths = calc_length(ds_lengths, PADDING, KERNEL_SIZE, STRIDE, True)
        m = jnp.arange(h.shape[1])[None, :] >= ds_lengths[:, None]
        h = jnp.where(m[:, :, None], 0.0, h)
        masks.append(m)
        residuals.append(h)
    masks = masks[:-1][::-1]
    residuals = residuals[:-1][::-1]
    x_ds = h

    z = x_ds
    for i in range(NUM_REPEATS):
        z = jax.nn.relu(conv_up(z))
        if i == NUM_REPEATS - 1:
            z = z[:, :z.shape[1] - pad_n, :]
        z = jnp.where(masks[i][:, :, None], 0.0, z)
        cat = jnp.concatenate([z, residuals[i]], axis=-1)
        z = jnp.einsum("btk,ok->bto", cat, params["merge_w"], precision=hp_prec) \
            + params["merge_b"]
    return x_ds, ds_lengths, z


# ----------------------------------------------------------------------------
if __name__ == "__main__":
    B, N, C = 2, 22, 32          # in_channels == out_channels (module reuses one conv)
    key = jax.random.PRNGKey(0)
    k = jax.random.split(key, 7)

    params = {
        "conv_ds_w": jax.random.normal(k[0], (C, C, 4), jnp.float32) * 0.1,  # Conv1d (out,in,k)
        "conv_ds_b": jax.random.normal(k[1], (C,), jnp.float32) * 0.1,
        "conv_us_w": jax.random.normal(k[2], (C, C, 4), jnp.float32) * 0.1,  # ConvT1d (in,out,k)
        "conv_us_b": jax.random.normal(k[3], (C,), jnp.float32) * 0.1,
        "merge_w": jax.random.normal(k[4], (C, 2 * C), jnp.float32) * 0.1,   # Linear (out,in)
        "merge_b": jax.random.normal(k[5], (C,), jnp.float32) * 0.1,
    }

    x = jax.random.normal(k[6], (B, N, C), jnp.float32)
    length = jnp.array([22, 15], dtype=jnp.int32)

    r_ds, r_len, r_up = _reference_forward(x, length, params)

    # f32 MXU path: tight tolerance (f32 accumulate, f32 operands)
    fwd = jax.jit(functools.partial(upsample_downsample_forward, use_bf16=False))
    x_ds, ds_lengths, x_up = fwd(x, length, params)
    jax.block_until_ready((x_ds, ds_lengths, x_up))
    assert x_ds.shape == (B, 3, C)
    assert x_up.shape == (B, N, C)
    assert np.array_equal(np.asarray(ds_lengths), np.asarray(r_len))
    assert float(jnp.max(jnp.abs(x_ds - r_ds))) < 1e-3
    assert float(jnp.max(jnp.abs(x_up - r_up))) < 1e-3

    # bf16 MXU-operand path (v6e/v7x fast path): looser tolerance
    fwd_bf16 = jax.jit(functools.partial(upsample_downsample_forward, use_bf16=True))
    b_ds, b_len, b_up = fwd_bf16(x, length, params)
    jax.block_until_ready((b_ds, b_len, b_up))
    assert np.array_equal(np.asarray(b_len), np.asarray(r_len))
    assert float(jnp.max(jnp.abs(b_ds - r_ds))) < 5e-2
    assert float(jnp.max(jnp.abs(b_up - r_up))) < 5e-2

    print("KERNEL_OK")
</pallas_src>

<mosaic_0001>
module attributes {stable_mosaic.version = 11 : i64} {
  func.func @_fused_updown_kernel(%arg0: i32, %arg1: memref<2x4xi32, #tpu.memory_space<smem>>, %arg2: memref<1x24x32xf32, #tpu.memory_space<vmem>>, %arg3: memref<128x32xf32, #tpu.memory_space<vmem>>, %arg4: memref<1x32xf32, #tpu.memory_space<vmem>>, %arg5: memref<96x64xf32, #tpu.memory_space<vmem>>, %arg6: memref<1x32xf32, #tpu.memory_space<vmem>>, %arg7: memref<64x32xf32, #tpu.memory_space<vmem>>, %arg8: memref<1x32xf32, #tpu.memory_space<vmem>>, %arg9: memref<1x3x32xf32, #tpu.memory_space<vmem>>, %arg10: memref<1x22x32xf32, #tpu.memory_space<vmem>>, %arg11: memref<32x32xf32, #tpu.memory_space<vmem>>, %arg12: memref<16x32xf32, #tpu.memory_space<vmem>>, %arg13: memref<8x32xf32, #tpu.memory_space<vmem>>, %arg14: memref<16x32xf32, #tpu.memory_space<vmem>>, %arg15: memref<24x32xf32, #tpu.memory_space<vmem>>) attributes {dimension_semantics = [#tpu.dimension_semantics<parallel>], iteration_bounds = array<i64: 2>, scalar_prefetch = 1 : i64, scratch_operands = 5 : i64, tpu.core_type = #tpu.core_type<tc>, window_params = [{transform_indices = @transform_0, window_bounds = array<i64: 1, 24, 32>}, {pipeline_mode = #tpu.pipeline_mode<synchronous>, transform_indices = @transform_1, window_bounds = array<i64: 128, 32>}, {pipeline_mode = #tpu.pipeline_mode<synchronous>, transform_indices = @transform_2, window_bounds = array<i64: 1, 32>}, {pipeline_mode = #tpu.pipeline_mode<synchronous>, transform_indices = @transform_3, window_bounds = array<i64: 96, 64>}, {pipeline_mode = #tpu.pipeline_mode<synchronous>, transform_indices = @transform_4, window_bounds = array<i64: 1, 32>}, {pipeline_mode = #tpu.pipeline_mode<synchronous>, transform_indices = @transform_5, window_bounds = array<i64: 64, 32>}, {pipeline_mode = #tpu.pipeline_mode<synchronous>, transform_indices = @transform_6, window_bounds = array<i64: 1, 32>}, {transform_indices = @transform_7, window_bounds = array<i64: 1, 3, 32>}, {transform_indices = @transform_8, window_bounds = array<i64: 1, 22, 32>}]} {
    %c0 = arith.constant 0 : index
    %c0_0 = arith.constant 0 : index
    %0 = vector.load %arg3[%c0, %c0_0] : memref<128x32xf32, #tpu.memory_space<vmem>>, vector<128x32xf32>
    %c0_1 = arith.constant 0 : index
    %c0_2 = arith.constant 0 : index
    %1 = vector.load %arg5[%c0_1, %c0_2] : memref<96x64xf32, #tpu.memory_space<vmem>>, vector<96x64xf32>
    %c0_3 = arith.constant 0 : index
    %c0_4 = arith.constant 0 : index
    %2 = vector.load %arg7[%c0_3, %c0_4] : memref<64x32xf32, #tpu.memory_space<vmem>>, vector<64x32xf32>
    %c0_5 = arith.constant 0 : index
    %c0_6 = arith.constant 0 : index
    %3 = vector.load %arg4[%c0_5, %c0_6] : memref<1x32xf32, #tpu.memory_space<vmem>>, vector<1x32xf32>
    %c0_7 = arith.constant 0 : index
    %c0_8 = arith.constant 0 : index
    %4 = vector.load %arg6[%c0_7, %c0_8] : memref<1x32xf32, #tpu.memory_space<vmem>>, vector<1x32xf32>
    %c0_9 = arith.constant 0 : index
    %c0_10 = arith.constant 0 : index
    %5 = vector.load %arg6[%c0_9, %c0_10] : memref<1x32xf32, #tpu.memory_space<vmem>>, vector<1x32xf32>
    %6 = tpu.concatenate %4, %5 in 1 : vector<1x32xf32>, vector<1x32xf32> -> vector<1x64xf32>
    %c0_11 = arith.constant 0 : index
    %c0_12 = arith.constant 0 : index
    %7 = vector.load %arg8[%c0_11, %c0_12] : memref<1x32xf32, #tpu.memory_space<vmem>>, vector<1x32xf32>
    %c0_13 = arith.constant 0 : index
    %c0_14 = arith.constant 0 : index
    %c0_15 = arith.constant 0 : index
    %8 = vector.load %arg2[%c0_13, %c0_14, %c0_15] : memref<1x24x32xf32, #tpu.memory_space<vmem>>, vector<1x24x32xf32>
    %9 = vector.shape_cast %8 : vector<1x24x32xf32> to vector<24x32xf32>
    %cst = arith.constant 0.000000e+00 : f32
    %10 = vector.broadcast %cst : f32 to vector<1x32xf32>
    %c0_16 = arith.constant 0 : index
    %c0_17 = arith.constant 0 : index
    %11 = vector.load %arg11[%c0_16, %c0_17] : memref<32x32xf32, #tpu.memory_space<vmem>>, vector<1x32xf32>
    tpu.vector_store %arg11[%c0_16, %c0_17], %10 {strides = array<i32>} : memref<32x32xf32, #tpu.memory_space<vmem>>, vector<1x32xf32>,
    %c1 = arith.constant 1 : index
    %c0_18 = arith.constant 0 : index
    %12 = vector.load %arg11[%c1, %c0_18] : memref<32x32xf32, #tpu.memory_space<vmem>>, vector<24x32xf32>
    tpu.vector_store %arg11[%c1, %c0_18], %9 {strides = array<i32>} : memref<32x32xf32, #tpu.memory_space<vmem>>, vector<24x32xf32>,
    %c25 = arith.constant 25 : index
    %c0_19 = arith.constant 0 : index
    %13 = vector.load %arg11[%c25, %c0_19] : memref<32x32xf32, #tpu.memory_space<vmem>>, vector<1x32xf32>
    tpu.vector_store %arg11[%c25, %c0_19], %10 {strides = array<i32>} : memref<32x32xf32, #tpu.memory_space<vmem>>, vector<1x32xf32>,
    %c0_20 = arith.constant 0 : index
    %c0_21 = arith.constant 0 : index
    %14 = tpu.strided_load %arg11[%c0_20, %c0_21] {strides = array<i32: 2, 1>} : memref<32x32xf32, #tpu.memory_space<vmem>>, vector<12x32xf32>
    %c1_22 = arith.constant 1 : index
    %c0_23 = arith.constant 0 : index
    %15 = tpu.strided_load %arg11[%c1_22, %c0_23] {strides = array<i32: 2, 1>} : memref<32x32xf32, #tpu.memory_space<vmem>>, vector<12x32xf32>
    %c2 = arith.constant 2 : index
    %c0_24 = arith.constant 0 : index
    %16 = tpu.strided_load %arg11[%c2, %c0_24] {strides = array<i32: 2, 1>} : memref<32x32xf32, #tpu.memory_space<vmem>>, vector<12x32xf32>
    %c3 = arith.constant 3 : index
    %c0_25 = arith.constant 0 : index
    %17 = tpu.strided_load %arg11[%c3, %c0_25] {strides = array<i32: 2, 1>} : memref<32x32xf32, #tpu.memory_space<vmem>>, vector<12x32xf32>
    %18 = tpu.concatenate %14, %15, %16, %17 in 1 : vector<12x32xf32>, vector<12x32xf32>, vector<12x32xf32>, vector<12x32xf32> -> vector<12x128xf32>
    %cst_26 = arith.constant dense<0.000000e+00> : vector<12x32xf32>
    %19 = tpu.matmul %18, %0, %cst_26 {dimension_numbers = #tpu.dot_dimension_numbers<[1], [0], [0], [1], [0, 0, 1, 1], [], []>} : vector<12x128xf32>, vector<128x32xf32>, vector<12x32xf32> -> vector<12x32xf32>
    %20 = vector.broadcast %3 : vector<1x32xf32> to vector<12x32xf32>
    %21 = arith.addf %19, %20 : vector<12x32xf32>
    %cst_27 = arith.constant 0.000000e+00 : f32
    %22 = vector.broadcast %cst_27 : f32 to vector<12x32xf32>
    %23 = arith.maximumf %21, %22 : vector<12x32xf32>
    %24 = arith.index_cast %arg0 : i32 to index
    %c1_28 = arith.constant 1 : index
    %25 = memref.load %arg1[%24, %c1_28] : memref<2x4xi32, #tpu.memory_space<smem>>
    %26 = tpu.iota {dimensions = array<i32: 0>} : vector<12x1xi32>
    %27 = vector.broadcast %25 : i32 to vector<12x1xi32>
    %28 = arith.cmpi sge, %26, %27 : vector<12x1xi32>
    %cst_29 = arith.constant 0.000000e+00 : f32
    %29 = vector.shape_cast %28 : vector<12x1xi1> to vector<12x1xi1>
    %30 = vector.broadcast %29 : vector<12x1xi1> to vector<12x32xi1>
    %31 = vector.broadcast %cst_29 : f32 to vector<12x32xf32>
    %32 = arith.select %30, %31, %23 : vector<12x32xi1>, vector<12x32xf32>
    %cst_30 = arith.constant 0.000000e+00 : f32
    %33 = vector.broadcast %cst_30 : f32 to vector<1x32xf32>
    %c0_31 = arith.constant 0 : index
    %c0_32 = arith.constant 0 : index
    %34 = vector.load %arg12[%c0_31, %c0_32] : memref<16x32xf32, #tpu.memory_space<vmem>>, vector<1x32xf32>
    tpu.vector_store %arg12[%c0_31, %c0_32], %33 {strides = array<i32>} : memref<16x32xf32, #tpu.memory_space<vmem>>, vector<1x32xf32>,
    %c1_33 = arith.constant 1 : index
    %c0_34 = arith.constant 0 : index
    %35 = vector.load %arg12[%c1_33, %c0_34] : memref<16x32xf32, #tpu.memory_space<vmem>>, vector<12x32xf32>
    tpu.vector_store %arg12[%c1_33, %c0_34], %32 {strides = array<i32>} : memref<16x32xf32, #tpu.memory_space<vmem>>, vector<12x32xf32>,
    %c13 = arith.constant 13 : index
    %c0_35 = arith.constant 0 : index
    %36 = vector.load %arg12[%c13, %c0_35] : memref<16x32xf32, #tpu.memory_space<vmem>>, vector<1x32xf32>
    tpu.vector_store %arg12[%c13, %c0_35], %33 {strides = array<i32>} : memref<16x32xf32, #tpu.memory_space<vmem>>, vector<1x32xf32>,
    %c0_36 = arith.constant 0 : index
    %c0_37 = arith.constant 0 : index
    %37 = tpu.strided_load %arg12[%c0_36, %c0_37] {strides = array<i32: 2, 1>} : memref<16x32xf32, #tpu.memory_space<vmem>>, vector<6x32xf32>
    %c1_38 = arith.constant 1 : index
    %c0_39 = arith.constant 0 : index
    %38 = tpu.strided_load %arg12[%c1_38, %c0_39] {strides = array<i32: 2, 1>} : memref<16x32xf32, #tpu.memory_space<vmem>>, vector<6x32xf32>
    %c2_40 = arith.constant 2 : index
    %c0_41 = arith.constant 0 : index
    %39 = tpu.strided_load %arg12[%c2_40, %c0_41] {strides = array<i32: 2, 1>} : memref<16x32xf32, #tpu.memory_space<vmem>>, vector<6x32xf32>
    %c3_42 = arith.constant 3 : index
    %c0_43 = arith.constant 0 : index
    %40 = tpu.strided_load %arg12[%c3_42, %c0_43] {strides = array<i32: 2, 1>} : memref<16x32xf32, #tpu.memory_space<vmem>>, vector<6x32xf32>
    %41 = tpu.concatenate %37, %38, %39, %40 in 1 : vector<6x32xf32>, vector<6x32xf32>, vector<6x32xf32>, vector<6x32xf32> -> vector<6x128xf32>
    %cst_44 = arith.constant dense<0.000000e+00> : vector<6x32xf32>
    %42 = tpu.matmul %41, %0, %cst_44 {dimension_numbers = #tpu.dot_dimension_numbers<[1], [0], [0], [1], [0, 0, 1, 1], [], []>} : vector<6x128xf32>, vector<128x32xf32>, vector<6x32xf32> -> vector<6x32xf32>
    %43 = vector.broadcast %3 : vector<1x32xf32> to vector<6x32xf32>
    %44 = arith.addf %42, %43 : vector<6x32xf32>
    %cst_45 = arith.constant 0.000000e+00 : f32
    %45 = vector.broadcast %cst_45 : f32 to vector<6x32xf32>
    %46 = arith.maximumf %44, %45 : vector<6x32xf32>
    %47 = arith.index_cast %arg0 : i32 to index
    %c2_46 = arith.constant 2 : index
    %48 = memref.load %arg1[%47, %c2_46] : memref<2x4xi32, #tpu.memory_space<smem>>
    %49 = tpu.iota {dimensions = array<i32: 0>} : vector<6x1xi32>
    %50 = vector.broadcast %48 : i32 to vector<6x1xi32>
    %51 = arith.cmpi sge, %49, %50 : vector<6x1xi32>
    %cst_47 = arith.constant 0.000000e+00 : f32
    %52 = vector.shape_cast %51 : vector<6x1xi1> to vector<6x1xi1>
    %53 = vector.broadcast %52 : vector<6x1xi1> to vector<6x32xi1>
    %54 = vector.broadcast %cst_47 : f32 to vector<6x32xf32>
    %55 = arith.select %53, %54, %46 : vector<6x32xi1>, vector<6x32xf32>
    %cst_48 = arith.constant 0.000000e+00 : f32
    %56 = vector.broadcast %cst_48 : f32 to vector<1x32xf32>
    %c0_49 = arith.constant 0 : index
    %c0_50 = arith.constant 0 : index
    %57 = vector.load %arg13[%c0_49, %c0_50] : memref<8x32xf32, #tpu.memory_space<vmem>>, vector<1x32xf32>
    tpu.vector_store %arg13[%c0_49, %c0_50], %56 {strides = array<i32>} : memref<8x32xf32, #tpu.memory_space<vmem>>, vector<1x32xf32>,
    %c1_51 = arith.constant 1 : index
    %c0_52 = arith.constant 0 : index
    %58 = vector.load %arg13[%c1_51, %c0_52] : memref<8x32xf32, #tpu.memory_space<vmem>>, vector<6x32xf32>
    tpu.vector_store %arg13[%c1_51, %c0_52], %55 {strides = array<i32>} : memref<8x32xf32, #tpu.memory_space<vmem>>, vector<6x32xf32>,
    %c7 = arith.constant 7 : index
    %c0_53 = arith.constant 0 : index
    %59 = vector.load %arg13[%c7, %c0_53] : memref<8x32xf32, #tpu.memory_space<vmem>>, vector<1x32xf32>
    tpu.vector_store %arg13[%c7, %c0_53], %56 {strides = array<i32>} : memref<8x32xf32, #tpu.memory_space<vmem>>, vector<1x32xf32>,
    %c0_54 = arith.constant 0 : index
    %c0_55 = arith.constant 0 : index
    %60 = tpu.strided_load %arg13[%c0_54, %c0_55] {strides = array<i32: 2, 1>} : memref<8x32xf32, #tpu.memory_space<vmem>>, vector<3x32xf32>
    %c1_56 = arith.constant 1 : index
    %c0_57 = arith.constant 0 : index
    %61 = tpu.strided_load %arg13[%c1_56, %c0_57] {strides = array<i32: 2, 1>} : memref<8x32xf32, #tpu.memory_space<vmem>>, vector<3x32xf32>
    %c2_58 = arith.constant 2 : index
    %c0_59 = arith.constant 0 : index
    %62 = tpu.strided_load %arg13[%c2_58, %c0_59] {strides = array<i32: 2, 1>} : memref<8x32xf32, #tpu.memory_space<vmem>>, vector<3x32xf32>
    %c3_60 = arith.constant 3 : index
    %c0_61 = arith.constant 0 : index
    %63 = tpu.strided_load %arg13[%c3_60, %c0_61] {strides = array<i32: 2, 1>} : memref<8x32xf32, #tpu.memory_space<vmem>>, vector<3x32xf32>
    %64 = tpu.concatenate %60, %61, %62, %63 in 1 : vector<3x32xf32>, vector<3x32xf32>, vector<3x32xf32>, vector<3x32xf32> -> vector<3x128xf32>
    %cst_62 = arith.constant dense<0.000000e+00> : vector<3x32xf32>
    %65 = tpu.matmul %64, %0, %cst_62 {dimension_numbers = #tpu.dot_dimension_numbers<[1], [0], [0], [1], [0, 0, 1, 1], [], []>} : vector<3x128xf32>, vector<128x32xf32>, vector<3x32xf32> -> vector<3x32xf32>
    %66 = vector.broadcast %3 : vector<1x32xf32> to vector<3x32xf32>
    %67 = arith.addf %65, %66 : vector<3x32xf32>
    %cst_63 = arith.constant 0.000000e+00 : f32
    %68 = vector.broadcast %cst_63 : f32 to vector<3x32xf32>
    %69 = arith.maximumf %67, %68 : vector<3x32xf32>
    %70 = arith.index_cast %arg0 : i32 to index
    %c3_64 = arith.constant 3 : index
    %71 = memref.load %arg1[%70, %c3_64] : memref<2x4xi32, #tpu.memory_space<smem>>
    %72 = tpu.iota {dimensions = array<i32: 0>} : vector<3x1xi32>
    %73 = vector.broadcast %71 : i32 to vector<3x1xi32>
    %74 = arith.cmpi sge, %72, %73 : vector<3x1xi32>
    %cst_65 = arith.constant 0.000000e+00 : f32
    %75 = vector.shape_cast %74 : vector<3x1xi1> to vector<3x1xi1>
    %76 = vector.broadcast %75 : vector<3x1xi1> to vector<3x32xi1>
    %77 = vector.broadcast %cst_65 : f32 to vector<3x32xf32>
    %78 = arith.select %76, %77, %69 : vector<3x32xi1>, vector<3x32xf32>
    %c0_66 = arith.constant 0 : index
    %c0_67 = arith.constant 0 : index
    %c0_68 = arith.constant 0 : index
    %79 = vector.load %arg9[%c0_66, %c0_67, %c0_68] : memref<1x3x32xf32, #tpu.memory_space<vmem>>, vector<1x3x32xf32>
    %80 = vector.shape_cast %79 : vector<1x3x32xf32> to vector<3x32xf32>
    %81 = vector.shape_cast %78 : vector<3x32xf32> to vector<1x3x32xf32>
    tpu.vector_store %arg9[%c0_66, %c0_67, %c0_68], %81 {strides = array<i32>} : memref<1x3x32xf32, #tpu.memory_space<vmem>>, vector<1x3x32xf32>,
    %cst_69 = arith.constant 0.000000e+00 : f32
    %82 = vector.broadcast %cst_69 : f32 to vector<1x32xf32>
    %c0_70 = arith.constant 0 : index
    %c0_71 = arith.constant 0 : index
    %83 = vector.load %arg14[%c0_70, %c0_71] : memref<16x32xf32, #tpu.memory_space<vmem>>, vector<1x32xf32>
    tpu.vector_store %arg14[%c0_70, %c0_71], %82 {strides = array<i32>} : memref<16x32xf32, #tpu.memory_space<vmem>>, vector<1x32xf32>,
    %c1_72 = arith.constant 1 : index
    %c0_73 = arith.constant 0 : index
    %84 = vector.load %arg14[%c1_72, %c0_73] : memref<16x32xf32, #tpu.memory_space<vmem>>, vector<3x32xf32>
    tpu.vector_store %arg14[%c1_72, %c0_73], %78 {strides = array<i32>} : memref<16x32xf32, #tpu.memory_space<vmem>>, vector<3x32xf32>,
    %c4 = arith.constant 4 : index
    %c0_74 = arith.constant 0 : index
    %85 = vector.load %arg14[%c4, %c0_74] : memref<16x32xf32, #tpu.memory_space<vmem>>, vector<1x32xf32>
    tpu.vector_store %arg14[%c4, %c0_74], %82 {strides = array<i32>} : memref<16x32xf32, #tpu.memory_space<vmem>>, vector<1x32xf32>,
    %c0_75 = arith.constant 0 : index
    %c0_76 = arith.constant 0 : index
    %86 = vector.load %arg14[%c0_75, %c0_76] : memref<16x32xf32, #tpu.memory_space<vmem>>, vector<3x32xf32>
    %c1_77 = arith.constant 1 : index
    %c0_78 = arith.constant 0 : index
    %87 = vector.load %arg14[%c1_77, %c0_78] : memref<16x32xf32, #tpu.memory_space<vmem>>, vector<3x32xf32>
    %c2_79 = arith.constant 2 : index
    %c0_80 = arith.constant 0 : index
    %88 = vector.load %arg14[%c2_79, %c0_80] : memref<16x32xf32, #tpu.memory_space<vmem>>, vector<3x32xf32>
    %89 = tpu.concatenate %86, %87, %88 in 1 : vector<3x32xf32>, vector<3x32xf32>, vector<3x32xf32> -> vector<3x96xf32>
    %cst_81 = arith.constant dense<0.000000e+00> : vector<3x64xf32>
    %90 = tpu.matmul %89, %1, %cst_81 {dimension_numbers = #tpu.dot_dimension_numbers<[1], [0], [0], [1], [0, 0, 1, 1], [], []>} : vector<3x96xf32>, vector<96x64xf32>, vector<3x64xf32> -> vector<3x64xf32>
    %91 = vector.broadcast %6 : vector<1x64xf32> to vector<3x64xf32>
    %92 = arith.addf %90, %91 : vector<3x64xf32>
    %cst_82 = arith.constant 0.000000e+00 : f32
    %93 = vector.broadcast %cst_82 : f32 to vector<3x64xf32>
    %94 = arith.maximumf %92, %93 : vector<3x64xf32>
    %95 = vector.extract_strided_slice %94 {offsets = [0, 0], sizes = [3, 32], strides = [1, 1]} : vector<3x64xf32> to vector<3x32xf32>
    %c0_83 = arith.constant 0 : index
    %c0_84 = arith.constant 0 : index
    %96 = tpu.strided_load %arg15[%c0_83, %c0_84] {strides = array<i32: 2, 1>} : memref<24x32xf32, #tpu.memory_space<vmem>>, vector<3x32xf32>
    tpu.strided_store %arg15[%c0_83, %c0_84], %95 {strides = array<i32: 2, 1>} : memref<24x32xf32, #tpu.memory_space<vmem>>, vector<3x32xf32>
    %97 = vector.extract_strided_slice %94 {offsets = [0, 32], sizes = [3, 32], strides = [1, 1]} : vector<3x64xf32> to vector<3x32xf32>
    %c1_85 = arith.constant 1 : index
    %c0_86 = arith.constant 0 : index
    %98 = tpu.strided_load %arg15[%c1_85, %c0_86] {strides = array<i32: 2, 1>} : memref<24x32xf32, #tpu.memory_space<vmem>>, vector<3x32xf32>
    tpu.strided_store %arg15[%c1_85, %c0_86], %97 {strides = array<i32: 2, 1>} : memref<24x32xf32, #tpu.memory_space<vmem>>, vector<3x32xf32>
    %c0_87 = arith.constant 0 : index
    %c0_88 = arith.constant 0 : index
    %99 = vector.load %arg15[%c0_87, %c0_88] : memref<24x32xf32, #tpu.memory_space<vmem>>, vector<6x32xf32>
    %100 = arith.index_cast %arg0 : i32 to index
    %c2_89 = arith.constant 2 : index
    %101 = memref.load %arg1[%100, %c2_89] : memref<2x4xi32, #tpu.memory_space<smem>>
    %102 = tpu.iota {dimensions = array<i32: 0>} : vector<6x1xi32>
    %103 = vector.broadcast %101 : i32 to vector<6x1xi32>
    %104 = arith.cmpi sge, %102, %103 : vector<6x1xi32>
    %cst_90 = arith.constant 0.000000e+00 : f32
    %105 = vector.shape_cast %104 : vector<6x1xi1> to vector<6x1xi1>
    %106 = vector.broadcast %105 : vector<6x1xi1> to vector<6x32xi1>
    %107 = vector.broadcast %cst_90 : f32 to vector<6x32xf32>
    %108 = arith.select %106, %107, %99 : vector<6x32xi1>, vector<6x32xf32>
    %c1_91 = arith.constant 1 : index
    %c0_92 = arith.constant 0 : index
    %109 = vector.load %arg13[%c1_91, %c0_92] : memref<8x32xf32, #tpu.memory_space<vmem>>, vector<6x32xf32>
    %110 = tpu.concatenate %108, %109 in 1 : vector<6x32xf32>, vector<6x32xf32> -> vector<6x64xf32>
    %cst_93 = arith.constant dense<0.000000e+00> : vector<6x32xf32>
    %111 = tpu.matmul %110, %2, %cst_93 {dimension_numbers = #tpu.dot_dimension_numbers<[1], [0], [0], [1], [0, 0, 1, 1], [], []>} : vector<6x64xf32>, vector<64x32xf32>, vector<6x32xf32> -> vector<6x32xf32>
    %112 = vector.broadcast %7 : vector<1x32xf32> to vector<6x32xf32>
    %113 = arith.addf %111, %112 : vector<6x32xf32>
    %cst_94 = arith.constant 0.000000e+00 : f32
    %114 = vector.broadcast %cst_94 : f32 to vector<1x32xf32>
    %c0_95 = arith.constant 0 : index
    %c0_96 = arith.constant 0 : index
    %115 = vector.load %arg14[%c0_95, %c0_96] : memref<16x32xf32, #tpu.memory_space<vmem>>, vector<1x32xf32>
    tpu.vector_store %arg14[%c0_95, %c0_96], %114 {strides = array<i32>} : memref<16x32xf32, #tpu.memory_space<vmem>>, vector<1x32xf32>,
    %c1_97 = arith.constant 1 : index
    %c0_98 = arith.constant 0 : index
    %116 = vector.load %arg14[%c1_97, %c0_98] : memref<16x32xf32, #tpu.memory_space<vmem>>, vector<6x32xf32>
    tpu.vector_store %arg14[%c1_97, %c0_98], %113 {strides = array<i32>} : memref<16x32xf32, #tpu.memory_space<vmem>>, vector<6x32xf32>,
    %c7_99 = arith.constant 7 : index
    %c0_100 = arith.constant 0 : index
    %117 = vector.load %arg14[%c7_99, %c0_100] : memref<16x32xf32, #tpu.memory_space<vmem>>, vector<1x32xf32>
    tpu.vector_store %arg14[%c7_99, %c0_100], %114 {strides = array<i32>} : memref<16x32xf32, #tpu.memory_space<vmem>>, vector<1x32xf32>,
    %c0_101 = arith.constant 0 : index
    %c0_102 = arith.constant 0 : index
    %118 = vector.load %arg14[%c0_101, %c0_102] : memref<16x32xf32, #tpu.memory_space<vmem>>, vector<6x32xf32>
    %c1_103 = arith.constant 1 : index
    %c0_104 = arith.constant 0 : index
    %119 = vector.load %arg14[%c1_103, %c0_104] : memref<16x32xf32, #tpu.memory_space<vmem>>, vector<6x32xf32>
    %c2_105 = arith.constant 2 : index
    %c0_106 = arith.constant 0 : index
    %120 = vector.load %arg14[%c2_105, %c0_106] : memref<16x32xf32, #tpu.memory_space<vmem>>, vector<6x32xf32>
    %121 = tpu.concatenate %118, %119, %120 in 1 : vector<6x32xf32>, vector<6x32xf32>, vector<6x32xf32> -> vector<6x96xf32>
    %cst_107 = arith.constant dense<0.000000e+00> : vector<6x64xf32>
    %122 = tpu.matmul %121, %1, %cst_107 {dimension_numbers = #tpu.dot_dimension_numbers<[1], [0], [0], [1], [0, 0, 1, 1], [], []>} : vector<6x96xf32>, vector<96x64xf32>, vector<6x64xf32> -> vector<6x64xf32>
    %123 = vector.broadcast %6 : vector<1x64xf32> to vector<6x64xf32>
    %124 = arith.addf %122, %123 : vector<6x64xf32>
    %cst_108 = arith.constant 0.000000e+00 : f32
    %125 = vector.broadcast %cst_108 : f32 to vector<6x64xf32>
    %126 = arith.maximumf %124, %125 : vector<6x64xf32>
    %127 = vector.extract_strided_slice %126 {offsets = [0, 0], sizes = [6, 32], strides = [1, 1]} : vector<6x64xf32> to vector<6x32xf32>
    %c0_109 = arith.constant 0 : index
    %c0_110 = arith.constant 0 : index
    %128 = tpu.strided_load %arg15[%c0_109, %c0_110] {strides = array<i32: 2, 1>} : memref<24x32xf32, #tpu.memory_space<vmem>>, vector<6x32xf32>
    tpu.strided_store %arg15[%c0_109, %c0_110], %127 {strides = array<i32: 2, 1>} : memref<24x32xf32, #tpu.memory_space<vmem>>, vector<6x32xf32>
    %129 = vector.extract_strided_slice %126 {offsets = [0, 32], sizes = [6, 32], strides = [1, 1]} : vector<6x64xf32> to vector<6x32xf32>
    %c1_111 = arith.constant 1 : index
    %c0_112 = arith.constant 0 : index
    %130 = tpu.strided_load %arg15[%c1_111, %c0_112] {strides = array<i32: 2, 1>} : memref<24x32xf32, #tpu.memory_space<vmem>>, vector<6x32xf32>
    tpu.strided_store %arg15[%c1_111, %c0_112], %129 {strides = array<i32: 2, 1>} : memref<24x32xf32, #tpu.memory_space<vmem>>, vector<6x32xf32>
    %c0_113 = arith.constant 0 : index
    %c0_114 = arith.constant 0 : index
    %131 = vector.load %arg15[%c0_113, %c0_114] : memref<24x32xf32, #tpu.memory_space<vmem>>, vector<12x32xf32>
    %132 = arith.index_cast %arg0 : i32 to index
    %c1_115 = arith.constant 1 : index
    %133 = memref.load %arg1[%132, %c1_115] : memref<2x4xi32, #tpu.memory_space<smem>>
    %134 = tpu.iota {dimensions = array<i32: 0>} : vector<12x1xi32>
    %135 = vector.broadcast %133 : i32 to vector<12x1xi32>
    %136 = arith.cmpi sge, %134, %135 : vector<12x1xi32>
    %cst_116 = arith.constant 0.000000e+00 : f32
    %137 = vector.shape_cast %136 : vector<12x1xi1> to vector<12x1xi1>
    %138 = vector.broadcast %137 : vector<12x1xi1> to vector<12x32xi1>
    %139 = vector.broadcast %cst_116 : f32 to vector<12x32xf32>
    %140 = arith.select %138, %139, %131 : vector<12x32xi1>, vector<12x32xf32>
    %c1_117 = arith.constant 1 : index
    %c0_118 = arith.constant 0 : index
    %141 = vector.load %arg12[%c1_117, %c0_118] : memref<16x32xf32, #tpu.memory_space<vmem>>, vector<12x32xf32>
    %142 = tpu.concatenate %140, %141 in 1 : vector<12x32xf32>, vector<12x32xf32> -> vector<12x64xf32>
    %cst_119 = arith.constant dense<0.000000e+00> : vector<12x32xf32>
    %143 = tpu.matmul %142, %2, %cst_119 {dimension_numbers = #tpu.dot_dimension_numbers<[1], [0], [0], [1], [0, 0, 1, 1], [], []>} : vector<12x64xf32>, vector<64x32xf32>, vector<12x32xf32> -> vector<12x32xf32>
    %144 = vector.broadcast %7 : vector<1x32xf32> to vector<12x32xf32>
    %145 = arith.addf %143, %144 : vector<12x32xf32>
    %cst_120 = arith.constant 0.000000e+00 : f32
    %146 = vector.broadcast %cst_120 : f32 to vector<1x32xf32>
    %c0_121 = arith.constant 0 : index
    %c0_122 = arith.constant 0 : index
    %147 = vector.load %arg14[%c0_121, %c0_122] : memref<16x32xf32, #tpu.memory_space<vmem>>, vector<1x32xf32>
    tpu.vector_store %arg14[%c0_121, %c0_122], %146 {strides = array<i32>} : memref<16x32xf32, #tpu.memory_space<vmem>>, vector<1x32xf32>,
    %c1_123 = arith.constant 1 : index
    %c0_124 = arith.constant 0 : index
    %148 = vector.load %arg14[%c1_123, %c0_124] : memref<16x32xf32, #tpu.memory_space<vmem>>, vector<12x32xf32>
    tpu.vector_store %arg14[%c1_123, %c0_124], %145 {strides = array<i32>} : memref<16x32xf32, #tpu.memory_space<vmem>>, vector<12x32xf32>,
    %c13_125 = arith.constant 13 : index
    %c0_126 = arith.constant 0 : index
    %149 = vector.load %arg14[%c13_125, %c0_126] : memref<16x32xf32, #tpu.memory_space<vmem>>, vector<1x32xf32>
    tpu.vector_store %arg14[%c13_125, %c0_126], %146 {strides = array<i32>} : memref<16x32xf32, #tpu.memory_space<vmem>>, vector<1x32xf32>,
    %c0_127 = arith.constant 0 : index
    %c0_128 = arith.constant 0 : index
    %150 = vector.load %arg14[%c0_127, %c0_128] : memref<16x32xf32, #tpu.memory_space<vmem>>, vector<12x32xf32>
    %c1_129 = arith.constant 1 : index
    %c0_130 = arith.constant 0 : index
    %151 = vector.load %arg14[%c1_129, %c0_130] : memref<16x32xf32, #tpu.memory_space<vmem>>, vector<12x32xf32>
    %c2_131 = arith.constant 2 : index
    %c0_132 = arith.constant 0 : index
    %152 = vector.load %arg14[%c2_131, %c0_132] : memref<16x32xf32, #tpu.memory_space<vmem>>, vector<12x32xf32>
    %153 = tpu.concatenate %150, %151, %152 in 1 : vector<12x32xf32>, vector<12x32xf32>, vector<12x32xf32> -> vector<12x96xf32>
    %cst_133 = arith.constant dense<0.000000e+00> : vector<12x64xf32>
    %154 = tpu.matmul %153, %1, %cst_133 {dimension_numbers = #tpu.dot_dimension_numbers<[1], [0], [0], [1], [0, 0, 1, 1], [], []>} : vector<12x96xf32>, vector<96x64xf32>, vector<12x64xf32> -> vector<12x64xf32>
    %155 = vector.broadcast %6 : vector<1x64xf32> to vector<12x64xf32>
    %156 = arith.addf %154, %155 : vector<12x64xf32>
    %cst_134 = arith.constant 0.000000e+00 : f32
    %157 = vector.broadcast %cst_134 : f32 to vector<12x64xf32>
    %158 = arith.maximumf %156, %157 : vector<12x64xf32>
    %159 = vector.extract_strided_slice %158 {offsets = [0, 0], sizes = [12, 32], strides = [1, 1]} : vector<12x64xf32> to vector<12x32xf32>
    %c0_135 = arith.constant 0 : index
    %c0_136 = arith.constant 0 : index
    %160 = tpu.strided_load %arg15[%c0_135, %c0_136] {strides = array<i32: 2, 1>} : memref<24x32xf32, #tpu.memory_space<vmem>>, vector<12x32xf32>
    tpu.strided_store %arg15[%c0_135, %c0_136], %159 {strides = array<i32: 2, 1>} : memref<24x32xf32, #tpu.memory_space<vmem>>, vector<12x32xf32>
    %161 = vector.extract_strided_slice %158 {offsets = [0, 32], sizes = [12, 32], strides = [1, 1]} : vector<12x64xf32> to vector<12x32xf32>
    %c1_137 = arith.constant 1 : index
    %c0_138 = arith.constant 0 : index
    %162 = tpu.strided_load %arg15[%c1_137, %c0_138] {strides = array<i32: 2, 1>} : memref<24x32xf32, #tpu.memory_space<vmem>>, vector<12x32xf32>
    tpu.strided_store %arg15[%c1_137, %c0_138], %161 {strides = array<i32: 2, 1>} : memref<24x32xf32, #tpu.memory_space<vmem>>, vector<12x32xf32>
    %c0_139 = arith.constant 0 : index
    %c0_140 = arith.constant 0 : index
    %163 = vector.load %arg15[%c0_139, %c0_140] : memref<24x32xf32, #tpu.memory_space<vmem>>, vector<22x32xf32>
    %164 = arith.index_cast %arg0 : i32 to index
    %c0_141 = arith.constant 0 : index
    %165 = memref.load %arg1[%164, %c0_141] : memref<2x4xi32, #tpu.memory_space<smem>>
    %166 = tpu.iota {dimensions = array<i32: 0>} : vector<22x1xi32>
    %167 = vector.broadcast %165 : i32 to vector<22x1xi32>
    %168 = arith.cmpi sge, %166, %167 : vector<22x1xi32>
    %cst_142 = arith.constant 0.000000e+00 : f32
    %169 = vector.shape_cast %168 : vector<22x1xi1> to vector<22x1xi1>
    %170 = vector.broadcast %169 : vector<22x1xi1> to vector<22x32xi1>
    %171 = vector.broadcast %cst_142 : f32 to vector<22x32xf32>
    %172 = arith.select %170, %171, %163 : vector<22x32xi1>, vector<22x32xf32>
    %c1_143 = arith.constant 1 : index
    %c0_144 = arith.constant 0 : index
    %173 = vector.load %arg11[%c1_143, %c0_144] : memref<32x32xf32, #tpu.memory_space<vmem>>, vector<22x32xf32>
    %174 = tpu.concatenate %172, %173 in 1 : vector<22x32xf32>, vector<22x32xf32> -> vector<22x64xf32>
    %cst_145 = arith.constant dense<0.000000e+00> : vector<22x32xf32>
    %175 = tpu.matmul %174, %2, %cst_145 {dimension_numbers = #tpu.dot_dimension_numbers<[1], [0], [0], [1], [0, 0, 1, 1], [], []>} : vector<22x64xf32>, vector<64x32xf32>, vector<22x32xf32> -> vector<22x32xf32>
    %176 = vector.broadcast %7 : vector<1x32xf32> to vector<22x32xf32>
    %177 = arith.addf %175, %176 : vector<22x32xf32>
    %c0_146 = arith.constant 0 : index
    %c0_147 = arith.constant 0 : index
    %c0_148 = arith.constant 0 : index
    %178 = vector.load %arg10[%c0_146, %c0_147, %c0_148] : memref<1x22x32xf32, #tpu.memory_space<vmem>>, vector<1x22x32xf32>
    %179 = vector.shape_cast %178 : vector<1x22x32xf32> to vector<22x32xf32>
    %180 = vector.shape_cast %177 : vector<22x32xf32> to vector<1x22x32xf32>
    tpu.vector_store %arg10[%c0_146, %c0_147, %c0_148], %180 {strides = array<i32>} : memref<1x22x32xf32, #tpu.memory_space<vmem>>, vector<1x22x32xf32>,
    return
  }
  func.func @transform_0(%arg0: i32, %arg1: memref<2x4xi32, #tpu.memory_space<smem>>) -> (i32, i32, i32) {
    %c0_i32 = arith.constant 0 : i32
    %c0_i32_0 = arith.constant 0 : i32
    %c0_i32_1 = arith.constant 0 : i32
    return %arg0, %c0_i32, %c0_i32_0 : i32, i32, i32
  }
  func.func @transform_1(%arg0: i32, %arg1: memref<2x4xi32, #tpu.memory_space<smem>>) -> (i32, i32) {
    %c0_i32 = arith.constant 0 : i32
    %c0_i32_0 = arith.constant 0 : i32
    %c0_i32_1 = arith.constant 0 : i32
    return %c0_i32, %c0_i32_0 : i32, i32
  }
  func.func @transform_2(%arg0: i32, %arg1: memref<2x4xi32, #tpu.memory_space<smem>>) -> (i32, i32) {
    %c0_i32 = arith.constant 0 : i32
    %c0_i32_0 = arith.constant 0 : i32
    %c0_i32_1 = arith.constant 0 : i32
    return %c0_i32, %c0_i32_0 : i32, i32
  }
  func.func @transform_3(%arg0: i32, %arg1: memref<2x4xi32, #tpu.memory_space<smem>>) -> (i32, i32) {
    %c0_i32 = arith.constant 0 : i32
    %c0_i32_0 = arith.constant 0 : i32
    %c0_i32_1 = arith.constant 0 : i32
    return %c0_i32, %c0_i32_0 : i32, i32
  }
  func.func @transform_4(%arg0: i32, %arg1: memref<2x4xi32, #tpu.memory_space<smem>>) -> (i32, i32) {
    %c0_i32 = arith.constant 0 : i32
    %c0_i32_0 = arith.constant 0 : i32
    %c0_i32_1 = arith.constant 0 : i32
    return %c0_i32, %c0_i32_0 : i32, i32
  }
  func.func @transform_5(%arg0: i32, %arg1: memref<2x4xi32, #tpu.memory_space<smem>>) -> (i32, i32) {
    %c0_i32 = arith.constant 0 : i32
    %c0_i32_0 = arith.constant 0 : i32
    %c0_i32_1 = arith.constant 0 : i32
    return %c0_i32, %c0_i32_0 : i32, i32
  }
  func.func @transform_6(%arg0: i32, %arg1: memref<2x4xi32, #tpu.memory_space<smem>>) -> (i32, i32) {
    %c0_i32 = arith.constant 0 : i32
    %c0_i32_0 = arith.constant 0 : i32
    %c0_i32_1 = arith.constant 0 : i32
    return %c0_i32, %c0_i32_0 : i32, i32
  }
  func.func @transform_7(%arg0: i32, %arg1: memref<2x4xi32, #tpu.memory_space<smem>>) -> (i32, i32, i32) {
    %c0_i32 = arith.constant 0 : i32
    %c0_i32_0 = arith.constant 0 : i32
    %c0_i32_1 = arith.constant 0 : i32
    return %arg0, %c0_i32, %c0_i32_0 : i32, i32, i32
  }
  func.func @transform_8(%arg0: i32, %arg1: memref<2x4xi32, #tpu.memory_space<smem>>) -> (i32, i32, i32) {
    %c0_i32 = arith.constant 0 : i32
    %c0_i32_0 = arith.constant 0 : i32
    %c0_i32_1 = arith.constant 0 : i32
    return %arg0, %c0_i32, %c0_i32_0 : i32, i32, i32
  }
}

</mosaic_0001>

<llo_original>
// kernel: upsample_downsample_forward.1
$region0: #{upsample_downsample_forward.1}
  #allocation0 [shape = 'u32[]', space=smem, size = 0x4, offset = 0x4, fixed_abs, tag = 'smem constant byte address 0x4 - core index']
  #allocation1 [shape = 'u32[144,128]{1,0:T(1,128)}', space=vmem, size = 0x12000, scoped, tag = 'internal scratch']
  #allocation2 [shape = 'f32[32,32]{1,0:T(8,128)}', space=vmem, size = 0x4000, scoped, tag = 'scratch operand']
  #allocation3 [shape = 'f32[16,32]{1,0:T(8,128)}', space=vmem, size = 0x2000, scoped, tag = 'scratch operand']
  #allocation4 [shape = 'f32[8,32]{1,0:T(8,128)}', space=vmem, size = 0x1000, scoped, tag = 'scratch operand']
  #allocation5 [shape = 'f32[16,32]{1,0:T(8,128)}', space=vmem, size = 0x2000, scoped, tag = 'scratch operand']
  #allocation6 [shape = 'f32[24,32]{1,0:T(8,128)}', space=vmem, size = 0x3000, scoped, tag = 'scratch operand']
  #allocation7 [shape = 's32[1]{0}', space=sflag, size = 0x4, scoped, tag = 'scoped memory for upsample_downsample_forward.1']
  #allocation8 [shape = 'u8[1024]{0}', space=smem, size = 0x400, scoped, tag = 'prefetched SMEM operand 0']
  %s0 = inlined_call_operand.vmem [shape: s32[2,4], index: 0, kind: input, shape index: {}]
  %s1 = inlined_call_operand.vmem [shape: f32[2,24,32], index: 1, kind: input, shape index: {}]
  %s2 = inlined_call_operand.vmem [shape: f32[128,32], index: 2, kind: input, shape index: {}]
  %s3 = inlined_call_operand.vmem [shape: f32[1,32], index: 3, kind: input, shape index: {}]
  %s4 = inlined_call_operand.vmem [shape: f32[96,64], index: 4, kind: input, shape index: {}]
  %s5 = inlined_call_operand.vmem [shape: f32[1,32], index: 5, kind: input, shape index: {}]
  %s6 = inlined_call_operand.vmem [shape: f32[64,32], index: 6, kind: input, shape index: {}]
  %s7 = inlined_call_operand.vmem [shape: f32[1,32], index: 7, kind: input, shape index: {}]
  %s8 = inlined_call_operand.vmem [shape: f32[2,3,32], index: 8, kind: output, shape index: {0}]
  %s9 = inlined_call_operand.vmem [shape: f32[2,22,32], index: 9, kind: output, shape index: {1}]
  %10 = xla_tuple %s8, %s9
  %s11 = sld [smem:[#allocation0]]
  $region69: #{upsample_downsample_forward.1} parent=0
    _
  %s13 = ssub.s32 1, %s11
  %s14 = scalar_select 0, %s13, %s11
  %s15 = sshll.u32 %s0, 4
  %s16 = int_to_ptr.vmem [resolvable:$true] %s15
  %18 = dma.vmem_to_smem %s16, 32, [#allocation8], [#allocation7]
  %19 = dma.done [#allocation7], 32
  %20 = sfence
  loop: start=0, step=1, limit=4
  $region2: #{upsample_downsample_forward.1} parent=0 // loop_pre_header
    _
  $region3: #{upsample_downsample_forward.1} parent=0 // loop_header
    %s22 = sphi 0, %s26
    %p23 = scmp.ge.s32.totalorder %s22, 4
    %s32 = sphi 0, %s34
    %s35 = sphi 0, %s32
    %s36 = sphi 0, %s35
    %s52 = sphi 0, %s36
    %s56 = sphi 0, %s56
    %s58 = sphi 0, %s56
    %s59 = sphi 0, %s58
    %s73 = sphi 0, %s59
    %s77 = sphi 0, %s77
    %s79 = sphi 0, %s77
    %s80 = sphi 0, %s79
    %s94 = sphi 0, %s80
    %s98 = sphi 0, %s98
    %s100 = sphi 0, %s98
    %s101 = sphi 0, %s100
    %s115 = sphi 0, %s101
    %s119 = sphi 0, %s119
    %s121 = sphi 0, %s119
    %s122 = sphi 0, %s121
    %s136 = sphi 0, %s122
    %s140 = sphi 0, %s140
    %s142 = sphi 0, %s140
    %s143 = sphi 0, %s142
    %s157 = sphi 0, %s143
    %s161 = sphi 0, %s161
    %s163 = sphi 0, %s161
    %s164 = sphi 0, %s163
    %s178 = sphi 0, %s164
    %s184 = sphi 0, %s186
    %s187 = sphi 0, %s184
    %s188 = sphi 0, %s187
    %s204 = sphi 0, %s188
    %s210 = sphi 0, %s212
    %s213 = sphi 0, %s210
    %s214 = sphi 0, %s213
    %s230 = sphi 0, %s214
  $region4: #{upsample_downsample_forward.1} parent=0 // loop_header_branch
    %25 = sbr.rel (%p23) target = $region8
  $region5: #{upsample_downsample_forward.1} parent=0 // loop_body
    %s27 = ssub.s32 %s22, 1
    %s28 = ssub.s32 %s22, 2
    %s29 = sadd.s32 %s22, 1
    %s30 = ssub.s32 %s22, %s29
    %p31 = scmp.eq.s32.totalorder %s30, 0
    %s33 = sadd.s32 %s32, 1
    %s34 = scalar_select %p31, %s32, %s33
    %p37 = pneg %p31
    %p38 = scmp.eq.s32.totalorder %s22, 1
    %p39 = por %p37, %p38
    %p40 = scmp.ne.s32.totalorder %s32, %s35
    %p41 = scmp.eq.s32.totalorder %s22, 0
    %p42 = por %p40, %p41
    %p43 = scmp.ne.s32.totalorder %s32, %s35
    %p44 = scmp.eq.s32.totalorder %s27, 1
    %p45 = por %p43, %p44
    %p46 = scmp.ne.s32.totalorder %s35, %s36
    %p47 = scmp.eq.s32.totalorder %s27, 0
    %p48 = por %p46, %p47
    %p49 = scmp.ne.s32.totalorder %s35, %s36
    %p50 = scmp.eq.s32.totalorder %s28, 1
    %p51 = por %p49, %p50
    %p53 = scmp.ne.s32.totalorder %s36, %s52
    %p54 = scmp.eq.s32.totalorder %s28, 0
    %p55 = por %p53, %p54
    %s57 = sadd.s32 %s56, 1
    %p60 = scmp.eq.s32.totalorder %s22, 1
    %p61 = scmp.ne.s32.totalorder %s56, %s58
    %p62 = scmp.eq.s32.totalorder %s22, 0
    %p63 = por %p61, %p62
    %p64 = scmp.ne.s32.totalorder %s56, %s58
    %p65 = scmp.eq.s32.totalorder %s27, 1
    %p66 = por %p64, %p65
    %p67 = scmp.ne.s32.totalorder %s58, %s59
    %p68 = scmp.eq.s32.totalorder %s27, 0
    %p69 = por %p67, %p68
    %p70 = scmp.ne.s32.totalorder %s58, %s59
    %p71 = scmp.eq.s32.totalorder %s28, 1
    %p72 = por %p70, %p71
    %p74 = scmp.ne.s32.totalorder %s59, %s73
    %p75 = scmp.eq.s32.totalorder %s28, 0
    %p76 = por %p74, %p75
    %s78 = sadd.s32 %s77, 1
    %p81 = scmp.eq.s32.totalorder %s22, 1
    %p82 = scmp.ne.s32.totalorder %s77, %s79
    %p83 = scmp.eq.s32.totalorder %s22, 0
    %p84 = por %p82, %p83
    %p85 = scmp.ne.s32.totalorder %s77, %s79
    %p86 = scmp.eq.s32.totalorder %s27, 1
    %p87 = por %p85, %p86
    %p88 = scmp.ne.s32.totalorder %s79, %s80
    %p89 = scmp.eq.s32.totalorder %s27, 0
    %p90 = por %p88, %p89
    %p91 = scmp.ne.s32.totalorder %s79, %s80
    %p92 = scmp.eq.s32.totalorder %s28, 1
    %p93 = por %p91, %p92
    %p95 = scmp.ne.s32.totalorder %s80, %s94
    %p96 = scmp.eq.s32.totalorder %s28, 0
    %p97 = por %p95, %p96
    %s99 = sadd.s32 %s98, 1
    %p102 = scmp.eq.s32.totalorder %s22, 1
    %p103 = scmp.ne.s32.totalorder %s98, %s100
    %p104 = scmp.eq.s32.totalorder %s22, 0
    %p105 = por %p103, %p104
    %p106 = scmp.ne.s32.totalorder %s98, %s100
    %p107 = scmp.eq.s32.totalorder %s27, 1
    %p108 = por %p106, %p107
    %p109 = scmp.ne.s32.totalorder %s100, %s101
    %p110 = scmp.eq.s32.totalorder %s27, 0
    %p111 = por %p109, %p110
    %p112 = scmp.ne.s32.totalorder %s100, %s101
    %p113 = scmp.eq.s32.totalorder %s28, 1
    %p114 = por %p112, %p113
    %p116 = scmp.ne.s32.totalorder %s101, %s115
    %p117 = scmp.eq.s32.totalorder %s28, 0
    %p118 = por %p116, %p117
    %s120 = sadd.s32 %s119, 1
    %p123 = scmp.eq.s32.totalorder %s22, 1
    %p124 = scmp.ne.s32.totalorder %s119, %s121
    %p125 = scmp.eq.s32.totalorder %s22, 0
    %p126 = por %p124, %p125
    %p127 = scmp.ne.s32.totalorder %s119, %s121
    %p128 = scmp.eq.s32.totalorder %s27, 1
    %p129 = por %p127, %p128
    %p130 = scmp.ne.s32.totalorder %s121, %s122
    %p131 = scmp.eq.s32.totalorder %s27, 0
    %p132 = por %p130, %p131
    %p133 = scmp.ne.s32.totalorder %s121, %s122
    %p134 = scmp.eq.s32.totalorder %s28, 1
    %p135 = por %p133, %p134
    %p137 = scmp.ne.s32.totalorder %s122, %s136
    %p138 = scmp.eq.s32.totalorder %s28, 0
    %p139 = por %p137, %p138
    %s141 = sadd.s32 %s140, 1
    %p144 = scmp.eq.s32.totalorder %s22, 1
    %p145 = scmp.ne.s32.totalorder %s140, %s142
    %p146 = scmp.eq.s32.totalorder %s22, 0
    %p147 = por %p145, %p146
    %p148 = scmp.ne.s32.totalorder %s140, %s142
    %p149 = scmp.eq.s32.totalorder %s27, 1
    %p150 = por %p148, %p149
    %p151 = scmp.ne.s32.totalorder %s142, %s143
    %p152 = scmp.eq.s32.totalorder %s27, 0
    %p153 = por %p151, %p152
    %p154 = scmp.ne.s32.totalorder %s142, %s143
    %p155 = scmp.eq.s32.totalorder %s28, 1
    %p156 = por %p154, %p155
    %p158 = scmp.ne.s32.totalorder %s143, %s157
    %p159 = scmp.eq.s32.totalorder %s28, 0
    %p160 = por %p158, %p159
    %s162 = sadd.s32 %s161, 1
    %p165 = scmp.eq.s32.totalorder %s22, 1
    %p166 = scmp.ne.s32.totalorder %s161, %s163
    %p167 = scmp.eq.s32.totalorder %s22, 0
    %p168 = por %p166, %p167
    %p169 = scmp.ne.s32.totalorder %s161, %s163
    %p170 = scmp.eq.s32.totalorder %s27, 1
    %p171 = por %p169, %p170
    %p172 = scmp.ne.s32.totalorder %s163, %s164
    %p173 = scmp.eq.s32.totalorder %s27, 0
    %p174 = por %p172, %p173
    %p175 = scmp.ne.s32.totalorder %s163, %s164
    %p176 = scmp.eq.s32.totalorder %s28, 1
    %p177 = por %p175, %p176
    %p179 = scmp.ne.s32.totalorder %s164, %s178
    %p180 = scmp.eq.s32.totalorder %s28, 0
    %p181 = por %p179, %p180
    %s182 = ssub.s32 %s22, %s29
    %p183 = scmp.eq.s32.totalorder %s182, 0
    %s185 = sadd.s32 %s184, 1
    %s186 = scalar_select %p183, %s184, %s185
    %p189 = pneg %p183
    %p190 = scmp.eq.s32.totalorder %s22, 1
    %p191 = por %p189, %p190
    %p192 = scmp.ne.s32.totalorder %s184, %s187
    %p193 = scmp.eq.s32.totalorder %s22, 0
    %p194 = por %p192, %p193
    %p195 = scmp.ne.s32.totalorder %s184, %s187
    %p196 = scmp.eq.s32.totalorder %s27, 1
    %p197 = por %p195, %p196
    %p198 = scmp.ne.s32.totalorder %s187, %s188
    %p199 = scmp.eq.s32.totalorder %s27, 0
    %p200 = por %p198, %p199
    %p201 = scmp.ne.s32.totalorder %s187, %s188
    %p202 = scmp.eq.s32.totalorder %s28, 1
    %p203 = por %p201, %p202
    %p205 = scmp.ne.s32.totalorder %s188, %s204
    %p206 = scmp.eq.s32.totalorder %s28, 0
    %p207 = por %p205, %p206
    %s208 = ssub.s32 %s22, %s29
    %p209 = scmp.eq.s32.totalorder %s208, 0
    %s211 = sadd.s32 %s210, 1
    %s212 = scalar_select %p209, %s210, %s211
    %p215 = pneg %p209
    %p216 = scmp.eq.s32.totalorder %s22, 1
    %p217 = por %p215, %p216
    %p218 = scmp.ne.s32.totalorder %s210, %s213
    %p219 = scmp.eq.s32.totalorder %s22, 0
    %p220 = por %p218, %p219
    %p221 = scmp.ne.s32.totalorder %s210, %s213
    %p222 = scmp.eq.s32.totalorder %s27, 1
    %p223 = por %p221, %p222
    %p224 = scmp.ne.s32.totalorder %s213, %s214
    %p225 = scmp.eq.s32.totalorder %s27, 0
    %p226 = por %p224, %p225
    %p227 = scmp.ne.s32.totalorder %s213, %s214
    %p228 = scmp.eq.s32.totalorder %s28, 1
    %p229 = por %p227, %p228
    %p231 = scmp.ne.s32.totalorder %s214, %s230
    %p232 = scmp.eq.s32.totalorder %s28, 0
    %p233 = por %p231, %p232
    %p234 = scmp.le.s32.totalorder 1, %s22
    %p235 = scmp.lt.s32.totalorder %s22, 3
    %p236 = pnand %p234, %p235
    %p237 = pneg %p236
    // Predicated region
    $region9: #{upsample_downsample_forward.1} parent=5 // pred_check
      _
    $region10: #{upsample_downsample_forward.1} parent=5 // pred_check_branch
      %239 = sbr.rel (%p236) target = $region12
    $region11: #{upsample_downsample_forward.1} parent=5 // pred_region
      %s240 = ssub.s32 %s22, 1
      // Predicated region
      $region13: #{upsample_downsample_forward.1} parent=11 // pred_check
        %p241 = pneg %p69
      $region14: #{upsample_downsample_forward.1} parent=11 // pred_check_branch
        %243 = sbr.rel (%p241) target = $region16
      $region15: #{upsample_downsample_forward.1} parent=11 // pred_region
        _
      $region16: #{upsample_downsample_forward.1} parent=11 // pred_fallthru
        _
      // Predicated region
      $region17: #{upsample_downsample_forward.1} parent=11 // pred_check
        %p244 = pneg %p90
      $region18: #{upsample_downsample_forward.1} parent=11 // pred_check_branch
        %246 = sbr.rel (%p244) target = $region20
      $region19: #{upsample_downsample_forward.1} parent=11 // pred_region
        _
      $region20: #{upsample_downsample_forward.1} parent=11 // pred_fallthru
        _
      // Predicated region
      $region21: #{upsample_downsample_forward.1} parent=11 // pred_check
        %p247 = pneg %p111
      $region22: #{upsample_downsample_forward.1} parent=11 // pred_check_branch
        %249 = sbr.rel (%p247) target = $region24
      $region23: #{upsample_downsample_forward.1} parent=11 // pred_region
        _
      $region24: #{upsample_downsample_forward.1} parent=11 // pred_fallthru
        _
      // Predicated region
      $region25: #{upsample_downsample_forward.1} parent=11 // pred_check
        %p250 = pneg %p132
      $region26: #{upsample_downsample_forward.1} parent=11 // pred_check_branch
        %252 = sbr.rel (%p250) target = $region28
      $region27: #{upsample_downsample_forward.1} parent=11 // pred_region
        _
      $region28: #{upsample_downsample_forward.1} parent=11 // pred_fallthru
        _
      // Predicated region
      $region29: #{upsample_downsample_forward.1} parent=11 // pred_check
        %p253 = pneg %p153
      $region30: #{upsample_downsample_forward.1} parent=11 // pred_check_branch
        %255 = sbr.rel (%p253) target = $region32
      $region31: #{upsample_downsample_forward.1} parent=11 // pred_region
        _
      $region32: #{upsample_downsample_forward.1} parent=11 // pred_fallthru
        _
      // Predicated region
      $region33: #{upsample_downsample_forward.1} parent=11 // pred_check
        %p256 = pneg %p174
      $region34: #{upsample_downsample_forward.1} parent=11 // pred_check_branch
        %258 = sbr.rel (%p256) target = $region36
      $region35: #{upsample_downsample_forward.1} parent=11 // pred_region
        _
      $region36: #{upsample_downsample_forward.1} parent=11 // pred_fallthru
        _
    $region12: #{upsample_downsample_forward.1} parent=5 // pred_fallthru
      _
    %p259 = scmp.lt.s32.totalorder %s22, 2
    // Predicated region
    $region37: #{upsample_downsample_forward.1} parent=5 // pred_check
      %p260 = pneg %p259
    $region38: #{upsample_downsample_forward.1} parent=5 // pred_check_branch
      %262 = sbr.rel (%p260) target = $region40
    $region39: #{upsample_downsample_forward.1} parent=5 // pred_region
      // Predicated region
      $region41: #{upsample_downsample_forward.1} parent=39 // pred_check
        %p263 = pneg %p42
      $region42: #{upsample_downsample_forward.1} parent=39 // pred_check_branch
        %265 = sbr.rel (%p263) target = $region44
      $region43: #{upsample_downsample_forward.1} parent=39 // pred_region
        %p266 = scmp.lt.s32.totalorder %s22, 1
        %s267 = scalar_select %p266, %s22, 1
        %s268 = smul.addr %s267, 3
        %s269 = smul.addr %s268, 8
        %s270 = scalar_lea.vmem %s1, %s269
      $region44: #{upsample_downsample_forward.1} parent=39 // pred_fallthru
        _
    $region40: #{upsample_downsample_forward.1} parent=5 // pred_fallthru
      _
    %p271 = scmp.le.s32.totalorder 1, %s22
    %p272 = scmp.lt.s32.totalorder %s22, 3
    %p273 = pnand %p271, %p272
    %p274 = pneg %p273
    // Predicated region
    $region45: #{upsample_downsample_forward.1} parent=5 // pred_check
      _
    $region46: #{upsample_downsample_forward.1} parent=5 // pred_check_branch
      %276 = sbr.rel (%p273) target = $region48
    $region47: #{upsample_downsample_forward.1} parent=5 // pred_region
      %s277 = ssub.s32 %s22, 1
      %p278 = scmp.lt.s32.totalorder %s27, 1
      %s279 = scalar_select %p278, %s27, 1
      %s280 = smul.addr %s279, 3
      %s281 = smul.addr %s280, 8
      %s282 = scalar_lea.vmem %s1, %s281
      %p283 = pneg %p48
      %p284 = pneg %p45
      %p285 = pneg %p69
      %p286 = pneg %p66
      %p287 = pneg %p90
      %p288 = pneg %p87
      %p289 = pneg %p111
      %p290 = pneg %p108
      %p291 = pneg %p132
      %p292 = pneg %p129
      %p293 = pneg %p153
      %p294 = pneg %p150
      %p295 = pneg %p174
      %p296 = pneg %p171
      %p297 = pneg %p200
      %p298 = pneg %p197
      %p299 = scmp.lt.s32.totalorder %s27, 1
      %s300 = scalar_select %p299, %s27, 1
      %s301 = smul.addr %s300, 4
      %s302 = scalar_lea.vmem %s8, %s301
      %p303 = pneg %p226
      %p304 = pneg %p223
      %p305 = scmp.lt.s32.totalorder %s27, 1
      %s306 = scalar_select %p305, %s27, 1
      %s307 = smul.addr %s306, 3
      %s308 = smul.addr %s307, 8
      %s309 = scalar_lea.vmem %s9, %s308
      %p310 = scmp.lt.s32.totalorder %s27, 1
      %s311 = scalar_select %p310, %s27, 1
      %s312 = smul.addr %s311, 3
      %s313 = smul.addr %s312, 8
      %s314 = scalar_lea.vmem %s1, %s313
      %p315 = scmp.lt.s32.totalorder %s27, 1
      %s316 = scalar_select %p315, %s27, 1
      %s317 = smul.addr %s316, 4
      %s318 = scalar_lea.vmem %s8, %s317
      %p319 = scmp.lt.s32.totalorder %s27, 1
      %s320 = scalar_select %p319, %s27, 1
      %s321 = smul.addr %s320, 3
      %s322 = smul.addr %s321, 8
      %s323 = scalar_lea.vmem %s9, %s322
      %v324 = vld [vmem:[%s2] sm:$0xff]
      %v325 = vld [vmem:[%s2 + $0x8] sm:$0xff]
      %v326 = vld [vmem:[%s2 + $0x10] sm:$0xff]
      %v327 = vld [vmem:[%s2 + $0x18] sm:$0xff]
      %v328 = vld [vmem:[%s2 + $0x20] sm:$0xff]
      %v329 = vld [vmem:[%s2 + $0x28] sm:$0xff]
      %v330 = vld [vmem:[%s2 + $0x30] sm:$0xff]
      %v331 = vld [vmem:[%s2 + $0x38] sm:$0xff]
      %v332 = vld [vmem:[%s2 + $0x40] sm:$0xff]
      %v333 = vld [vmem:[%s2 + $0x48] sm:$0xff]
      %v334 = vld [vmem:[%s2 + $0x50] sm:$0xff]
      %v335 = vld [vmem:[%s2 + $0x58] sm:$0xff]
      %v336 = vld [vmem:[%s2 + $0x60] sm:$0xff]
      %v337 = vld [vmem:[%s2 + $0x68] sm:$0xff]
      %v338 = vld [vmem:[%s2 + $0x70] sm:$0xff]
      %v339 = vld [vmem:[%s2 + $0x78] sm:$0xff]
      %v340 = vld [vmem:[%s4] sm:$0xff]
      %v341 = vld [vmem:[%s4 + $0x8] sm:$0xff]
      %v342 = vld [vmem:[%s4 + $0x10] sm:$0xff]
      %v343 = vld [vmem:[%s4 + $0x18] sm:$0xff]
      %v344 = vld [vmem:[%s4 + $0x20] sm:$0xff]
      %v345 = vld [vmem:[%s4 + $0x28] sm:$0xff]
      %v346 = vld [vmem:[%s4 + $0x30] sm:$0xff]
      %v347 = vld [vmem:[%s4 + $0x38] sm:$0xff]
      %v348 = vld [vmem:[%s4 + $0x40] sm:$0xff]
      %v349 = vld [vmem:[%s4 + $0x48] sm:$0xff]
      %v350 = vld [vmem:[%s4 + $0x50] sm:$0xff]
      %v351 = vld [vmem:[%s4 + $0x58] sm:$0xff]
      %v352 = vld [vmem:[%s6] sm:$0xff]
      %v353 = vld [vmem:[%s6 + $0x8] sm:$0xff]
      %v354 = vld [vmem:[%s6 + $0x10] sm:$0xff]
      %v355 = vld [vmem:[%s6 + $0x18] sm:$0xff]
      %v356 = vld [vmem:[%s6 + $0x20] sm:$0xff]
      %v357 = vld [vmem:[%s6 + $0x28] sm:$0xff]
      %v358 = vld [vmem:[%s6 + $0x30] sm:$0xff]
      %v359 = vld [vmem:[%s6 + $0x38] sm:$0xff]
      %v360 = vld [vmem:[%s3] sm:$0x1]
      %v361 = vld [vmem:[%s5] sm:$0x1]
      %v363 = vlaneseq
      %v364 = vshrl.u32 %v363, 7
      %v365 = vsub.s32 0, %v364
      %v366 = vrot.slane %v361, %v365
      %367 = vrot.lane.b32.xlu0 %v366, 32
      %v368 = vpop.permute.xlu0 %367
      %vm370 = vcmask 261120
      %v371 = vsel %vm370, %v361, %v368
      %v372 = vld [vmem:[%s7] sm:$0x1]
      %v373 = vld [vmem:[%s314] sm:$0xff]
      %v374 = vld [vmem:[%s314 + $0x8] sm:$0xff]
      %v375 = vld [vmem:[%s314 + $0x10] sm:$0xff]
      %vm376 = vcmask 253952
      %377 = vst.msk [vmem:[#allocation2] sm:$0x1] %vm376, 0.0
      %378 = vst.msk [vmem:[#allocation2 + $0x1] sm:$0xff] %vm370, %v373
      %379 = vst.msk [vmem:[#allocation2 + $0x9] sm:$0xff] %vm370, %v374
      %380 = vst.msk [vmem:[#allocation2 + $0x11] sm:$0xff] %vm370, %v375
      %381 = vst.msk [vmem:[#allocation2 + $0x19] sm:$0x1] %vm376, 0.0
      %v382 = vld [vmem:[#allocation2] ss:$2 sm:$0xff]
      %s383 = scalar_lea.vmem [#allocation2], 16
      %v384 = vld [vmem:[%s383] ss:$2 sm:$0xf]
      %s385 = scalar_lea.vmem [#allocation2], 1
      %v386 = vld [vmem:[%s385] ss:$2 sm:$0xff]
      %s387 = scalar_lea.vmem [#allocation2], 17
      %v388 = vld [vmem:[%s387] ss:$2 sm:$0xf]
      %s389 = scalar_lea.vmem [#allocation2], 2
      %v390 = vld [vmem:[%s389] ss:$2 sm:$0xff]
      %s391 = scalar_lea.vmem [#allocation2], 18
      %v392 = vld [vmem:[%s391] ss:$2 sm:$0xf]
      %s393 = scalar_lea.vmem [#allocation2], 3
      %v394 = vld [vmem:[%s393] ss:$2 sm:$0xff]
      %s395 = scalar_lea.vmem [#allocation2], 19
      %v396 = vld [vmem:[%s395] ss:$2 sm:$0xf]
      %399 = vrot.lane.b32.xlu0 %v386, 32
      %v400 = vpop.permute.xlu0 %399
      %401 = vrot.lane.b32.xlu0 %v388, 32
      %v402 = vpop.permute.xlu0 %401
      %407 = vrot.lane.b32.xlu0 %v390, 64
      %v408 = vpop.permute.xlu0 %407
      %409 = vrot.lane.b32.xlu0 %v392, 64
      %v410 = vpop.permute.xlu0 %409
      %415 = vrot.lane.b32.xlu0 %v394, 96
      %v416 = vpop.permute.xlu0 %415
      %417 = vrot.lane.b32.xlu0 %v396, 96
      %v418 = vpop.permute.xlu0 %417
      %v421 = vsel %vm370, %v382, %v400
      %v422 = vsel %vm370, %v384, %v402
      %vm423 = vcmask 523264
      %v424 = vsel %vm423, %v421, %v408
      %v425 = vsel %vm423, %v422, %v410
      %vm426 = vcmask 785408
      %v427 = vsel %vm426, %v424, %v416
      %v428 = vsel %vm426, %v425, %v418
      %v430 = vlaneseq
      %v431 = vshrl.u32 %v430, 7
      %v432 = vsub.s32 0, %v431
      %v433 = vrot.slane %v360, %v432
      %435 = vmatprep.subr.mxu0 0.0
      %436 = vmatpush1.msra.mxu0 %v324
      %437 = vmatprep.subr.mxu0 0.0
      %438 = vmatpush1.msra.mxu0 %v325
      %439 = vmatprep.subr.mxu0 0.0
      %440 = vmatpush1.msra.mxu0 %v326
      %441 = vmatprep.subr.mxu0 0.0
      %442 = vmatpush1.msra.mxu0 %v327
      %443 = vmatprep.subr.mxu0 0.0
      %444 = vmatpush1.msra.mxu0 %v328
      %445 = vmatprep.subr.mxu0 0.0
      %446 = vmatpush1.msra.mxu0 %v329
      %447 = vmatprep.subr.mxu0 0.0
      %448 = vmatpush1.msra.mxu0 %v330
      %449 = vmatprep.subr.mxu0 0.0
      %450 = vmatpush1.msra.mxu0 %v331
      %451 = vmatprep.subr.mxu0 0.0
      %452 = vmatpush1.msra.mxu0 %v332
      %453 = vmatprep.subr.mxu0 0.0
      %454 = vmatpush1.msra.mxu0 %v333
      %455 = vmatprep.subr.mxu0 0.0
      %456 = vmatpush1.msra.mxu0 %v334
      %457 = vmatprep.subr.mxu0 0.0
      %458 = vmatpush1.msra.mxu0 %v335
      %459 = vmatprep.subr.mxu0 0.0
      %460 = vmatpush1.msra.mxu0 %v336
      %461 = vmatprep.subr.mxu0 0.0
      %462 = vmatpush1.msra.mxu0 %v337
      %463 = vmatprep.subr.mxu0 0.0
      %464 = vmatpush1.msra.mxu0 %v338
      %465 = vmatprep.subr.mxu0 0.0
      %466 = vmatpush1.msra.mxu0 %v339
      %467 = vmatprep.subr.mxu0 0.0
      %468 = vmatpush1.msra.mxu0 0.0
      %469 = vmatprep.subr.mxu0 0.0
      %470 = vmatpush1.msra.mxu0 0.0
      %471 = vmatprep.subr.mxu0 0.0
      %472 = vmatpush1.msra.mxu0 0.0
      %473 = vmatprep.subr.mxu0 0.0
      %474 = vmatpush1.msra.mxu0 0.0
      %475 = vmatprep.subr.mxu0 0.0
      %476 = vmatpush1.msra.mxu0 0.0
      %477 = vmatprep.subr.mxu0 0.0
      %478 = vmatpush1.msra.mxu0 0.0
      %479 = vmatprep.subr.mxu0 0.0
      %480 = vmatpush1.msra.mxu0 0.0
      %481 = vmatprep.subr.mxu0 0.0
      %482 = vmatpush1.msra.mxu0 0.0
      %483 = vmatprep.subr.mxu0 0.0
      %484 = vmatpush1.msra.mxu0 0.0
      %485 = vmatprep.subr.mxu0 0.0
      %486 = vmatpush1.msra.mxu0 0.0
      %487 = vmatprep.subr.mxu0 0.0
      %488 = vmatpush1.msra.mxu0 0.0
      %489 = vmatprep.subr.mxu0 0.0
      %490 = vmatpush1.msra.mxu0 0.0
      %491 = vmatprep.subr.mxu0 0.0
      %492 = vmatpush1.msra.mxu0 0.0
      %493 = vmatprep.subr.mxu0 0.0
      %494 = vmatpush1.msra.mxu0 0.0
      %495 = vmatprep.subr.mxu0 0.0
      %496 = vmatpush1.msra.mxu0 0.0
      %497 = vmatprep.subr.mxu0 0.0
      %498 = vmatpush1.msra.mxu0 0.0
      %499 = vmatprep.mubr.f32.mxu0 0.0
      %500 = vmatmul.mubr.f32.gmra.mrb[0].mxu0 %v427
      %v501 = vpop.f32.mrb[0].mxu0
      %v502 = vadd.f32 %v433, %v501
      %v503 = vpop.f32.mrb[0].mxu0
      %504 = vmatprep.mubr.f32.mxu0 0.0
      %505 = vmatmul.mubr.f32.gmra.mrb[0].mxu0 %v428
      %v506 = vpop.f32.mrb[0].mxu0
      %v507 = vadd.f32 %v433, %v506
      %v508 = vpop.f32.mrb[0].mxu0
      %509 = vdwg.mxu0
      %v510 = vmax.f32 %v502, 0.0
      %v511 = vmax.f32 %v507, 0.0
      %s512 = smul.u32 %s27, 128
      %s513 = sadd.s32 %s512, 1
      %s514 = sld [smem:[#allocation8 + %s513]]
      %v515 = vlaneseq
      %v516 = vshrl.u32 %v515, 7
      %v517 = vadd.s32 %v516, 8
      %v518 = vstv %s514
      %vm519 = vcmp.ge.s32.totalorder %v516, %v518
      %vm520 = vcmp.ge.s32.totalorder %v517, %v518
      %v521 = vsel %vm519, 1, 0
      %v522 = vsel %vm520, 1, 0
      %vm523 = vcmp.eq.s32.totalorder %v521, 1
      %vm524 = vcmp.eq.s32.totalorder %v522, 1
      %v525 = vsel %vm523, 0.0, %v510
      %v526 = vsel %vm524, 0.0, %v511
      %527 = vst.msk [vmem:[#allocation3] sm:$0x1] %vm376, 0.0
      %528 = vst.msk [vmem:[#allocation3 + $0x1] sm:$0xff] %vm370, %v525
      %vm529 = vcmask 257024
      %530 = vst.msk [vmem:[#allocation3 + $0x9] sm:$0xf] %vm529, %v526
      %531 = vst.msk [vmem:[#allocation3 + $0xd] sm:$0x1] %vm376, 0.0
      %v532 = vld [vmem:[#allocation3] ss:$2 sm:$0x3f]
      %s533 = scalar_lea.vmem [#allocation3], 1
      %v534 = vld [vmem:[%s533] ss:$2 sm:$0x3f]
      %s535 = scalar_lea.vmem [#allocation3], 2
      %v536 = vld [vmem:[%s535] ss:$2 sm:$0x3f]
      %s537 = scalar_lea.vmem [#allocation3], 3
      %v538 = vld [vmem:[%s537] ss:$2 sm:$0x3f]
      %540 = vrot.lane.b32.xlu0 %v534, 32
      %v541 = vpop.permute.xlu0 %540
      %544 = vrot.lane.b32.xlu0 %v536, 64
      %v545 = vpop.permute.xlu0 %544
      %548 = vrot.lane.b32.xlu0 %v538, 96
      %v549 = vpop.permute.xlu0 %548
      %v551 = vsel %vm370, %v532, %v541
      %v552 = vsel %vm423, %v551, %v545
      %v553 = vsel %vm426, %v552, %v549
      %554 = vmatprep.subr.mxu0 0.0
      %555 = vmatpush1.msra.mxu0 %v324
      %556 = vmatprep.subr.mxu0 0.0
      %557 = vmatpush1.msra.mxu0 %v325
      %558 = vmatprep.subr.mxu0 0.0
      %559 = vmatpush1.msra.mxu0 %v326
      %560 = vmatprep.subr.mxu0 0.0
      %561 = vmatpush1.msra.mxu0 %v327
      %562 = vmatprep.subr.mxu0 0.0
      %563 = vmatpush1.msra.mxu0 %v328
      %564 = vmatprep.subr.mxu0 0.0
      %565 = vmatpush1.msra.mxu0 %v329
      %566 = vmatprep.subr.mxu0 0.0
      %567 = vmatpush1.msra.mxu0 %v330
      %568 = vmatprep.subr.mxu0 0.0
      %569 = vmatpush1.msra.mxu0 %v331
      %570 = vmatprep.subr.mxu0 0.0
      %571 = vmatpush1.msra.mxu0 %v332
      %572 = vmatprep.subr.mxu0 0.0
      %573 = vmatpush1.msra.mxu0 %v333
      %574 = vmatprep.subr.mxu0 0.0
      %575 = vmatpush1.msra.mxu0 %v334
      %576 = vmatprep.subr.mxu0 0.0
      %577 = vmatpush1.msra.mxu0 %v335
      %578 = vmatprep.subr.mxu0 0.0
      %579 = vmatpush1.msra.mxu0 %v336
      %580 = vmatprep.subr.mxu0 0.0
      %581 = vmatpush1.msra.mxu0 %v337
      %582 = vmatprep.subr.mxu0 0.0
      %583 = vmatpush1.msra.mxu0 %v338
      %584 = vmatprep.subr.mxu0 0.0
      %585 = vmatpush1.msra.mxu0 %v339
      %586 = vmatprep.subr.mxu0 0.0
      %587 = vmatpush1.msra.mxu0 0.0
      %588 = vmatprep.subr.mxu0 0.0
      %589 = vmatpush1.msra.mxu0 0.0
      %590 = vmatprep.subr.mxu0 0.0
      %591 = vmatpush1.msra.mxu0 0.0
      %592 = vmatprep.subr.mxu0 0.0
      %593 = vmatpush1.msra.mxu0 0.0
      %594 = vmatprep.subr.mxu0 0.0
      %595 = vmatpush1.msra.mxu0 0.0
      %596 = vmatprep.subr.mxu0 0.0
      %597 = vmatpush1.msra.mxu0 0.0
      %598 = vmatprep.subr.mxu0 0.0
      %599 = vmatpush1.msra.mxu0 0.0
      %600 = vmatprep.subr.mxu0 0.0
      %601 = vmatpush1.msra.mxu0 0.0
      %602 = vmatprep.subr.mxu0 0.0
      %603 = vmatpush1.msra.mxu0 0.0
      %604 = vmatprep.subr.mxu0 0.0
      %605 = vmatpush1.msra.mxu0 0.0
      %606 = vmatprep.subr.mxu0 0.0
      %607 = vmatpush1.msra.mxu0 0.0
      %608 = vmatprep.subr.mxu0 0.0
      %609 = vmatpush1.msra.mxu0 0.0
      %610 = vmatprep.subr.mxu0 0.0
      %611 = vmatpush1.msra.mxu0 0.0
      %612 = vmatprep.subr.mxu0 0.0
      %613 = vmatpush1.msra.mxu0 0.0
      %614 = vmatprep.subr.mxu0 0.0
      %615 = vmatpush1.msra.mxu0 0.0
      %616 = vmatprep.subr.mxu0 0.0
      %617 = vmatpush1.msra.mxu0 0.0
      %618 = vmatprep.mubr.f32.mxu0 0.0
      %619 = vmatmul.mubr.f32.gmra.mrb[0].mxu0 %v553
      %v620 = vpop.f32.mrb[0].mxu0
      %v621 = vadd.f32 %v433, %v620
      %v622 = vpop.f32.mrb[0].mxu0
      %623 = vdwg.mxu0
      %v624 = vmax.f32 %v621, 0.0
      %s625 = sadd.s32 %s512, 2
      %s626 = sld [smem:[#allocation8 + %s625]]
      %v627 = vstv %s626
      %vm628 = vcmp.ge.s32.totalorder %v516, %v627
      %v629 = vsel %vm628, 1, 0
      %vm630 = vcmp.eq.s32.totalorder %v629, 1
      %v631 = vsel %vm630, 0.0, %v624
      %632 = vst.msk [vmem:[#allocation4] sm:$0x1] %vm376, 0.0
      %vm633 = vcmask 259072
      %634 = vst.msk [vmem:[#allocation4 + $0x1] sm:$0x3f] %vm633, %v631
      %635 = vst.msk [vmem:[#allocation4 + $0x7] sm:$0x1] %vm376, 0.0
      %v636 = vld [vmem:[#allocation4] ss:$2 sm:$0x7]
      %s637 = scalar_lea.vmem [#allocation4], 1
      %v638 = vld [vmem:[%s637] ss:$2 sm:$0x7]
      %s639 = scalar_lea.vmem [#allocation4], 2
      %v640 = vld [vmem:[%s639] ss:$2 sm:$0x7]
      %s641 = scalar_lea.vmem [#allocation4], 3
      %v642 = vld [vmem:[%s641] ss:$2 sm:$0x7]
      %644 = vrot.lane.b32.xlu0 %v638, 32
      %v645 = vpop.permute.xlu0 %644
      %648 = vrot.lane.b32.xlu0 %v640, 64
      %v649 = vpop.permute.xlu0 %648
      %652 = vrot.lane.b32.xlu0 %v642, 96
      %v653 = vpop.permute.xlu0 %652
      %v655 = vsel %vm370, %v636, %v645
      %v656 = vsel %vm423, %v655, %v649
      %v657 = vsel %vm426, %v656, %v653
      %658 = vmatprep.subr.mxu0 0.0
      %659 = vmatpush1.msra.mxu0 %v324
      %660 = vmatprep.subr.mxu0 0.0
      %661 = vmatpush1.msra.mxu0 %v325
      %662 = vmatprep.subr.mxu0 0.0
      %663 = vmatpush1.msra.mxu0 %v326
      %664 = vmatprep.subr.mxu0 0.0
      %665 = vmatpush1.msra.mxu0 %v327
      %666 = vmatprep.subr.mxu0 0.0
      %667 = vmatpush1.msra.mxu0 %v328
      %668 = vmatprep.subr.mxu0 0.0
      %669 = vmatpush1.msra.mxu0 %v329
      %670 = vmatprep.subr.mxu0 0.0
      %671 = vmatpush1.msra.mxu0 %v330
      %672 = vmatprep.subr.mxu0 0.0
      %673 = vmatpush1.msra.mxu0 %v331
      %674 = vmatprep.subr.mxu0 0.0
      %675 = vmatpush1.msra.mxu0 %v332
      %676 = vmatprep.subr.mxu0 0.0
      %677 = vmatpush1.msra.mxu0 %v333
      %678 = vmatprep.subr.mxu0 0.0
      %679 = vmatpush1.msra.mxu0 %v334
      %680 = vmatprep.subr.mxu0 0.0
      %681 = vmatpush1.msra.mxu0 %v335
      %682 = vmatprep.subr.mxu0 0.0
      %683 = vmatpush1.msra.mxu0 %v336
      %684 = vmatprep.subr.mxu0 0.0
      %685 = vmatpush1.msra.mxu0 %v337
      %686 = vmatprep.subr.mxu0 0.0
      %687 = vmatpush1.msra.mxu0 %v338
      %688 = vmatprep.subr.mxu0 0.0
      %689 = vmatpush1.msra.mxu0 %v339
      %690 = vmatprep.subr.mxu0 0.0
      %691 = vmatpush1.msra.mxu0 0.0
      %692 = vmatprep.subr.mxu0 0.0
      %693 = vmatpush1.msra.mxu0 0.0
      %694 = vmatprep.subr.mxu0 0.0
      %695 = vmatpush1.msra.mxu0 0.0
      %696 = vmatprep.subr.mxu0 0.0
      %697 = vmatpush1.msra.mxu0 0.0
      %698 = vmatprep.subr.mxu0 0.0
      %699 = vmatpush1.msra.mxu0 0.0
      %700 = vmatprep.subr.mxu0 0.0
      %701 = vmatpush1.msra.mxu0 0.0
      %702 = vmatprep.subr.mxu0 0.0
      %703 = vmatpush1.msra.mxu0 0.0
      %704 = vmatprep.subr.mxu0 0.0
      %705 = vmatpush1.msra.mxu0 0.0
      %706 = vmatprep.subr.mxu0 0.0
      %707 = vmatpush1.msra.mxu0 0.0
      %708 = vmatprep.subr.mxu0 0.0
      %709 = vmatpush1.msra.mxu0 0.0
      %710 = vmatprep.subr.mxu0 0.0
      %711 = vmatpush1.msra.mxu0 0.0
      %712 = vmatprep.subr.mxu0 0.0
      %713 = vmatpush1.msra.mxu0 0.0
      %714 = vmatprep.subr.mxu0 0.0
      %715 = vmatpush1.msra.mxu0 0.0
      %716 = vmatprep.subr.mxu0 0.0
      %717 = vmatpush1.msra.mxu0 0.0
      %718 = vmatprep.subr.mxu0 0.0
      %719 = vmatpush1.msra.mxu0 0.0
      %720 = vmatprep.subr.mxu0 0.0
      %721 = vmatpush1.msra.mxu0 0.0
      %722 = vmatprep.mubr.f32.mxu0 0.0
      %723 = vmatmul.mubr.f32.gmra.mrb[0].mxu0 %v657
      %v724 = vpop.f32.mrb[0].mxu0
      %v725 = vadd.f32 %v433, %v724
      %v726 = vpop.f32.mrb[0].mxu0
      %727 = vdwg.mxu0
      %v728 = vmax.f32 %v725, 0.0
      %s729 = sadd.s32 %s512, 3
      %s730 = sld [smem:[#allocation8 + %s729]]
      %v731 = vstv %s730
      %vm732 = vcmp.ge.s32.totalorder %v516, %v731
      %v733 = vsel %vm732, 1, 0
      %vm734 = vcmp.eq.s32.totalorder %v733, 1
      %v735 = vsel %vm734, 0.0, %v728
      %vm736 = vcmask 256000
      %737 = vst.msk [vmem:[%s318] sm:$0x7] %vm736, %v735
      %738 = vst.msk [vmem:[#allocation5] sm:$0x1] %vm376, 0.0
      %739 = vst.msk [vmem:[#allocation5 + $0x1] sm:$0x7] %vm736, %v735
      %740 = vst.msk [vmem:[#allocation5 + $0x4] sm:$0x1] %vm376, 0.0
      %v741 = vld [vmem:[#allocation5] sm:$0x7]
      %v742 = vld [vmem:[#allocation5 + $0x1] sm:$0x7]
      %v743 = vld [vmem:[#allocation5 + $0x2] sm:$0x7]
      %745 = vrot.lane.b32.xlu0 %v742, 32
      %v746 = vpop.permute.xlu0 %745
      %749 = vrot.lane.b32.xlu0 %v743, 64
      %v750 = vpop.permute.xlu0 %749
      %v752 = vsel %vm370, %v741, %v746
      %v753 = vsel %vm423, %v752, %v750
      %v754 = vlaneseq
      %v755 = vshrl.u32 %v754, 7
      %v756 = vsub.s32 0, %v755
      %v757 = vrot.slane %v371, %v756
      %v759 = vsel %vm426, %v753, 0
      %761 = vmatprep.subr.mxu0 0.0
      %762 = vmatpush1.msra.mxu0 %v340
      %763 = vmatprep.subr.mxu0 0.0
      %764 = vmatpush1.msra.mxu0 %v341
      %765 = vmatprep.subr.mxu0 0.0
      %766 = vmatpush1.msra.mxu0 %v342
      %767 = vmatprep.subr.mxu0 0.0
      %768 = vmatpush1.msra.mxu0 %v343
      %769 = vmatprep.subr.mxu0 0.0
      %770 = vmatpush1.msra.mxu0 %v344
      %771 = vmatprep.subr.mxu0 0.0
      %772 = vmatpush1.msra.mxu0 %v345
      %773 = vmatprep.subr.mxu0 0.0
      %774 = vmatpush1.msra.mxu0 %v346
      %775 = vmatprep.subr.mxu0 0.0
      %776 = vmatpush1.msra.mxu0 %v347
      %777 = vmatprep.subr.mxu0 0.0
      %778 = vmatpush1.msra.mxu0 %v348
      %779 = vmatprep.subr.mxu0 0.0
      %780 = vmatpush1.msra.mxu0 %v349
      %781 = vmatprep.subr.mxu0 0.0
      %782 = vmatpush1.msra.mxu0 %v350
      %783 = vmatprep.subr.mxu0 0.0
      %784 = vmatpush1.msra.mxu0 %v351
      %785 = vmatprep.subr.mxu0 0.0
      %786 = vmatpush1.msra.mxu0 0.0
      %787 = vmatprep.subr.mxu0 0.0
      %788 = vmatpush1.msra.mxu0 0.0
      %789 = vmatprep.subr.mxu0 0.0
      %790 = vmatpush1.msra.mxu0 0.0
      %791 = vmatprep.subr.mxu0 0.0
      %792 = vmatpush1.msra.mxu0 0.0
      %793 = vmatprep.subr.mxu0 0.0
      %794 = vmatpush1.msra.mxu0 0.0
      %795 = vmatprep.subr.mxu0 0.0
      %796 = vmatpush1.msra.mxu0 0.0
      %797 = vmatprep.subr.mxu0 0.0
      %798 = vmatpush1.msra.mxu0 0.0
      %799 = vmatprep.subr.mxu0 0.0
      %800 = vmatpush1.msra.mxu0 0.0
      %801 = vmatprep.subr.mxu0 0.0
      %802 = vmatpush1.msra.mxu0 0.0
      %803 = vmatprep.subr.mxu0 0.0
      %804 = vmatpush1.msra.mxu0 0.0
      %805 = vmatprep.subr.mxu0 0.0
      %806 = vmatpush1.msra.mxu0 0.0
      %807 = vmatprep.subr.mxu0 0.0
      %808 = vmatpush1.msra.mxu0 0.0
      %809 = vmatprep.subr.mxu0 0.0
      %810 = vmatpush1.msra.mxu0 0.0
      %811 = vmatprep.subr.mxu0 0.0
      %812 = vmatpush1.msra.mxu0 0.0
      %813 = vmatprep.subr.mxu0 0.0
      %814 = vmatpush1.msra.mxu0 0.0
      %815 = vmatprep.subr.mxu0 0.0
      %816 = vmatpush1.msra.mxu0 0.0
      %817 = vmatprep.subr.mxu0 0.0
      %818 = vmatpush1.msra.mxu0 0.0
      %819 = vmatprep.subr.mxu0 0.0
      %820 = vmatpush1.msra.mxu0 0.0
      %821 = vmatprep.subr.mxu0 0.0
      %822 = vmatpush1.msra.mxu0 0.0
      %823 = vmatprep.subr.mxu0 0.0
      %824 = vmatpush1.msra.mxu0 0.0
      %825 = vmatprep.mubr.f32.mxu0 0.0
      %826 = vmatmul.mubr.f32.gmra.mrb[0].mxu0 %v759
      %v827 = vpop.f32.mrb[0].mxu0
      %v828 = vadd.f32 %v757, %v827
      %v829 = vpop.f32.mrb[0].mxu0
      %830 = vdwg.mxu0
      %v831 = vmax.f32 %v828, 0.0
      %832 = vst [vmem:[#allocation6] ss:$2 sm:$0x7] %v831
      %834 = vrot.lane.b32.xlu0 %v831, 96
      %v835 = vpop.permute.xlu0 %834
      %s837 = scalar_lea.vmem [#allocation6], 1
      %838 = vst [vmem:[%s837] ss:$2 sm:$0x7] %v835
      %v839 = vld [vmem:[#allocation6] sm:$0x3f]
      %s840 = sld [smem:[#allocation8 + %s625]]
      %v841 = vstv %s840
      %vm842 = vcmp.ge.s32.totalorder %v516, %v841
      %v843 = vsel %vm842, 1, 0
      %vm844 = vcmp.eq.s32.totalorder %v843, 1
      %v845 = vsel %vm844, 0.0, %v839
      %v846 = vld [vmem:[#allocation4 + $0x1] sm:$0x3f]
      %848 = vrot.lane.b32.xlu0 %v846, 32
      %v849 = vpop.permute.xlu0 %848
      %v851 = vsel %vm370, %v845, %v849
      %v853 = vlaneseq
      %v854 = vshrl.u32 %v853, 7
      %v855 = vsub.s32 0, %v854
      %v856 = vrot.slane %v372, %v855
      %v859 = vsel %vm423, %v851, 0
      %861 = vmatprep.subr.mxu0 0.0
      %862 = vmatpush1.msra.mxu0 %v352
      %863 = vmatprep.subr.mxu0 0.0
      %864 = vmatpush1.msra.mxu0 %v353
      %865 = vmatprep.subr.mxu0 0.0
      %866 = vmatpush1.msra.mxu0 %v354
      %867 = vmatprep.subr.mxu0 0.0
      %868 = vmatpush1.msra.mxu0 %v355
      %869 = vmatprep.subr.mxu0 0.0
      %870 = vmatpush1.msra.mxu0 %v356
      %871 = vmatprep.subr.mxu0 0.0
      %872 = vmatpush1.msra.mxu0 %v357
      %873 = vmatprep.subr.mxu0 0.0
      %874 = vmatpush1.msra.mxu0 %v358
      %875 = vmatprep.subr.mxu0 0.0
      %876 = vmatpush1.msra.mxu0 %v359
      %877 = vmatprep.subr.mxu0 0.0
      %878 = vmatpush1.msra.mxu0 0.0
      %879 = vmatprep.subr.mxu0 0.0
      %880 = vmatpush1.msra.mxu0 0.0
      %881 = vmatprep.subr.mxu0 0.0
      %882 = vmatpush1.msra.mxu0 0.0
      %883 = vmatprep.subr.mxu0 0.0
      %884 = vmatpush1.msra.mxu0 0.0
      %885 = vmatprep.subr.mxu0 0.0
      %886 = vmatpush1.msra.mxu0 0.0
      %887 = vmatprep.subr.mxu0 0.0
      %888 = vmatpush1.msra.mxu0 0.0
      %889 = vmatprep.subr.mxu0 0.0
      %890 = vmatpush1.msra.mxu0 0.0
      %891 = vmatprep.subr.mxu0 0.0
      %892 = vmatpush1.msra.mxu0 0.0
      %893 = vmatprep.subr.mxu0 0.0
      %894 = vmatpush1.msra.mxu0 0.0
      %895 = vmatprep.subr.mxu0 0.0
      %896 = vmatpush1.msra.mxu0 0.0
      %897 = vmatprep.subr.mxu0 0.0
      %898 = vmatpush1.msra.mxu0 0.0
      %899 = vmatprep.subr.mxu0 0.0
      %900 = vmatpush1.msra.mxu0 0.0
      %901 = vmatprep.subr.mxu0 0.0
      %902 = vmatpush1.msra.mxu0 0.0
      %903 = vmatprep.subr.mxu0 0.0
      %904 = vmatpush1.msra.mxu0 0.0
      %905 = vmatprep.subr.mxu0 0.0
      %906 = vmatpush1.msra.mxu0 0.0
      %907 = vmatprep.subr.mxu0 0.0
      %908 = vmatpush1.msra.mxu0 0.0
      %909 = vmatprep.subr.mxu0 0.0
      %910 = vmatpush1.msra.mxu0 0.0
      %911 = vmatprep.subr.mxu0 0.0
      %912 = vmatpush1.msra.mxu0 0.0
      %913 = vmatprep.subr.mxu0 0.0
      %914 = vmatpush1.msra.mxu0 0.0
      %915 = vmatprep.subr.mxu0 0.0
      %916 = vmatpush1.msra.mxu0 0.0
      %917 = vmatprep.subr.mxu0 0.0
      %918 = vmatpush1.msra.mxu0 0.0
      %919 = vmatprep.subr.mxu0 0.0
      %920 = vmatpush1.msra.mxu0 0.0
      %921 = vmatprep.subr.mxu0 0.0
      %922 = vmatpush1.msra.mxu0 0.0
      %923 = vmatprep.subr.mxu0 0.0
      %924 = vmatpush1.msra.mxu0 0.0
      %925 = vmatprep.mubr.f32.mxu0 0.0
      %926 = vmatmul.mubr.f32.gmra.mrb[0].mxu0 %v859
      %v927 = vpop.f32.mrb[0].mxu0
      %v928 = vadd.f32 %v856, %v927
      %v929 = vpop.f32.mrb[0].mxu0
      %930 = vdwg.mxu0
      %931 = vst.msk [vmem:[#allocation5] sm:$0x1] %vm376, 0.0
      %932 = vst.msk [vmem:[#allocation5 + $0x1] sm:$0x3f] %vm633, %v928
      %933 = vst.msk [vmem:[#allocation5 + $0x7] sm:$0x1] %vm376, 0.0
      %v934 = vld [vmem:[#allocation5] sm:$0x3f]
      %v935 = vld [vmem:[#allocation5 + $0x1] sm:$0x3f]
      %v936 = vld [vmem:[#allocation5 + $0x2] sm:$0x3f]
      %938 = vrot.lane.b32.xlu0 %v935, 32
      %v939 = vpop.permute.xlu0 %938
      %942 = vrot.lane.b32.xlu0 %v936, 64
      %v943 = vpop.permute.xlu0 %942
      %v945 = vsel %vm370, %v934, %v939
      %v946 = vsel %vm423, %v945, %v943
      %v948 = vsel %vm426, %v946, 0
      %950 = vmatprep.subr.mxu0 0.0
      %951 = vmatpush1.msra.mxu0 %v340
      %952 = vmatprep.subr.mxu0 0.0
      %953 = vmatpush1.msra.mxu0 %v341
      %954 = vmatprep.subr.mxu0 0.0
      %955 = vmatpush1.msra.mxu0 %v342
      %956 = vmatprep.subr.mxu0 0.0
      %957 = vmatpush1.msra.mxu0 %v343
      %958 = vmatprep.subr.mxu0 0.0
      %959 = vmatpush1.msra.mxu0 %v344
      %960 = vmatprep.subr.mxu0 0.0
      %961 = vmatpush1.msra.mxu0 %v345
      %962 = vmatprep.subr.mxu0 0.0
      %963 = vmatpush1.msra.mxu0 %v346
      %964 = vmatprep.subr.mxu0 0.0
      %965 = vmatpush1.msra.mxu0 %v347
      %966 = vmatprep.subr.mxu0 0.0
      %967 = vmatpush1.msra.mxu0 %v348
      %968 = vmatprep.subr.mxu0 0.0
      %969 = vmatpush1.msra.mxu0 %v349
      %970 = vmatprep.subr.mxu0 0.0
      %971 = vmatpush1.msra.mxu0 %v350
      %972 = vmatprep.subr.mxu0 0.0
      %973 = vmatpush1.msra.mxu0 %v351
      %974 = vmatprep.subr.mxu0 0.0
      %975 = vmatpush1.msra.mxu0 0.0
      %976 = vmatprep.subr.mxu0 0.0
      %977 = vmatpush1.msra.mxu0 0.0
      %978 = vmatprep.subr.mxu0 0.0
      %979 = vmatpush1.msra.mxu0 0.0
      %980 = vmatprep.subr.mxu0 0.0
      %981 = vmatpush1.msra.mxu0 0.0
      %982 = vmatprep.subr.mxu0 0.0
      %983 = vmatpush1.msra.mxu0 0.0
      %984 = vmatprep.subr.mxu0 0.0
      %985 = vmatpush1.msra.mxu0 0.0
      %986 = vmatprep.subr.mxu0 0.0
      %987 = vmatpush1.msra.mxu0 0.0
      %988 = vmatprep.subr.mxu0 0.0
      %989 = vmatpush1.msra.mxu0 0.0
      %990 = vmatprep.subr.mxu0 0.0
      %991 = vmatpush1.msra.mxu0 0.0
      %992 = vmatprep.subr.mxu0 0.0
      %993 = vmatpush1.msra.mxu0 0.0
      %994 = vmatprep.subr.mxu0 0.0
      %995 = vmatpush1.msra.mxu0 0.0
      %996 = vmatprep.subr.mxu0 0.0
      %997 = vmatpush1.msra.mxu0 0.0
      %998 = vmatprep.subr.mxu0 0.0
      %999 = vmatpush1.msra.mxu0 0.0
      %1000 = vmatprep.subr.mxu0 0.0
      %1001 = vmatpush1.msra.mxu0 0.0
      %1002 = vmatprep.subr.mxu0 0.0
      %1003 = vmatpush1.msra.mxu0 0.0
      %1004 = vmatprep.subr.mxu0 0.0
      %1005 = vmatpush1.msra.mxu0 0.0
      %1006 = vmatprep.subr.mxu0 0.0
      %1007 = vmatpush1.msra.mxu0 0.0
      %1008 = vmatprep.subr.mxu0 0.0
      %1009 = vmatpush1.msra.mxu0 0.0
      %1010 = vmatprep.subr.mxu0 0.0
      %1011 = vmatpush1.msra.mxu0 0.0
      %1012 = vmatprep.subr.mxu0 0.0
      %1013 = vmatpush1.msra.mxu0 0.0
      %1014 = vmatprep.mubr.f32.mxu0 0.0
      %1015 = vmatmul.mubr.f32.gmra.mrb[0].mxu0 %v948
      %v1016 = vpop.f32.mrb[0].mxu0
      %v1017 = vadd.f32 %v757, %v1016
      %v1018 = vpop.f32.mrb[0].mxu0
      %1019 = vdwg.mxu0
      %v1020 = vmax.f32 %v1017, 0.0
      %1021 = vst [vmem:[#allocation6] ss:$2 sm:$0x3f] %v1020
      %1023 = vrot.lane.b32.xlu0 %v1020, 96
      %v1024 = vpop.permute.xlu0 %1023
      %1026 = vst [vmem:[%s837] ss:$2 sm:$0x3f] %v1024
      %v1027 = vld [vmem:[#allocation6] sm:$0xff]
      %v1028 = vld [vmem:[#allocation6 + $0x8] sm:$0xf]
      %s1029 = sld [smem:[#allocation8 + %s513]]
      %v1030 = vstv %s1029
      %vm1031 = vcmp.ge.s32.totalorder %v516, %v1030
      %vm1032 = vcmp.ge.s32.totalorder %v517, %v1030
      %v1033 = vsel %vm1031, 1, 0
      %v1034 = vsel %vm1032, 1, 0
      %vm1035 = vcmp.eq.s32.totalorder %v1033, 1
      %vm1036 = vcmp.eq.s32.totalorder %v1034, 1
      %v1037 = vsel %vm1035, 0.0, %v1027
      %v1038 = vsel %vm1036, 0.0, %v1028
      %v1039 = vld [vmem:[#allocation3 + $0x1] sm:$0xff]
      %v1040 = vld [vmem:[#allocation3 + $0x9] sm:$0xf]
      %1043 = vrot.lane.b32.xlu0 %v1039, 32
      %v1044 = vpop.permute.xlu0 %1043
      %1045 = vrot.lane.b32.xlu0 %v1040, 32
      %v1046 = vpop.permute.xlu0 %1045
      %v1049 = vsel %vm370, %v1037, %v1044
      %v1050 = vsel %vm370, %v1038, %v1046
      %v1052 = vsel %vm423, %v1049, 0
      %v1055 = vsel %vm423, %v1050, 0
      %1057 = vmatprep.subr.mxu0 0.0
      %1058 = vmatpush1.msra.mxu0 %v352
      %1059 = vmatprep.subr.mxu0 0.0
      %1060 = vmatpush1.msra.mxu0 %v353
      %1061 = vmatprep.subr.mxu0 0.0
      %1062 = vmatpush1.msra.mxu0 %v354
      %1063 = vmatprep.subr.mxu0 0.0
      %1064 = vmatpush1.msra.mxu0 %v355
      %1065 = vmatprep.subr.mxu0 0.0
      %1066 = vmatpush1.msra.mxu0 %v356
      %1067 = vmatprep.subr.mxu0 0.0
      %1068 = vmatpush1.msra.mxu0 %v357
      %1069 = vmatprep.subr.mxu0 0.0
      %1070 = vmatpush1.msra.mxu0 %v358
      %1071 = vmatprep.subr.mxu0 0.0
      %1072 = vmatpush1.msra.mxu0 %v359
      %1073 = vmatprep.subr.mxu0 0.0
      %1074 = vmatpush1.msra.mxu0 0.0
      %1075 = vmatprep.subr.mxu0 0.0
      %1076 = vmatpush1.msra.mxu0 0.0
      %1077 = vmatprep.subr.mxu0 0.0
      %1078 = vmatpush1.msra.mxu0 0.0
      %1079 = vmatprep.subr.mxu0 0.0
      %1080 = vmatpush1.msra.mxu0 0.0
      %1081 = vmatprep.subr.mxu0 0.0
      %1082 = vmatpush1.msra.mxu0 0.0
      %1083 = vmatprep.subr.mxu0 0.0
      %1084 = vmatpush1.msra.mxu0 0.0
      %1085 = vmatprep.subr.mxu0 0.0
      %1086 = vmatpush1.msra.mxu0 0.0
      %1087 = vmatprep.subr.mxu0 0.0
      %1088 = vmatpush1.msra.mxu0 0.0
      %1089 = vmatprep.subr.mxu0 0.0
      %1090 = vmatpush1.msra.mxu0 0.0
      %1091 = vmatprep.subr.mxu0 0.0
      %1092 = vmatpush1.msra.mxu0 0.0
      %1093 = vmatprep.subr.mxu0 0.0
      %1094 = vmatpush1.msra.mxu0 0.0
      %1095 = vmatprep.subr.mxu0 0.0
      %1096 = vmatpush1.msra.mxu0 0.0
      %1097 = vmatprep.subr.mxu0 0.0
      %1098 = vmatpush1.msra.mxu0 0.0
      %1099 = vmatprep.subr.mxu0 0.0
      %1100 = vmatpush1.msra.mxu0 0.0
      %1101 = vmatprep.subr.mxu0 0.0
      %1102 = vmatpush1.msra.mxu0 0.0
      %1103 = vmatprep.subr.mxu0 0.0
      %1104 = vmatpush1.msra.mxu0 0.0
      %1105 = vmatprep.subr.mxu0 0.0
      %1106 = vmatpush1.msra.mxu0 0.0
      %1107 = vmatprep.subr.mxu0 0.0
      %1108 = vmatpush1.msra.mxu0 0.0
      %1109 = vmatprep.subr.mxu0 0.0
      %1110 = vmatpush1.msra.mxu0 0.0
      %1111 = vmatprep.subr.mxu0 0.0
      %1112 = vmatpush1.msra.mxu0 0.0
      %1113 = vmatprep.subr.mxu0 0.0
      %1114 = vmatpush1.msra.mxu0 0.0
      %1115 = vmatprep.subr.mxu0 0.0
      %1116 = vmatpush1.msra.mxu0 0.0
      %1117 = vmatprep.subr.mxu0 0.0
      %1118 = vmatpush1.msra.mxu0 0.0
      %1119 = vmatprep.subr.mxu0 0.0
      %1120 = vmatpush1.msra.mxu0 0.0
      %1121 = vmatprep.mubr.f32.mxu0 0.0
      %1122 = vmatmul.mubr.f32.gmra.mrb[0].mxu0 %v1052
      %v1123 = vpop.f32.mrb[0].mxu0
      %v1124 = vadd.f32 %v856, %v1123
      %v1125 = vpop.f32.mrb[0].mxu0
      %1126 = vmatprep.mubr.f32.mxu0 0.0
      %1127 = vmatmul.mubr.f32.gmra.mrb[0].mxu0 %v1055
      %v1128 = vpop.f32.mrb[0].mxu0
      %v1129 = vadd.f32 %v856, %v1128
      %v1130 = vpop.f32.mrb[0].mxu0
      %1131 = vdwg.mxu0
      %1132 = vst.msk [vmem:[#allocation5] sm:$0x1] %vm376, 0.0
      %1133 = vst.msk [vmem:[#allocation5 + $0x1] sm:$0xff] %vm370, %v1124
      %1134 = vst.msk [vmem:[#allocation5 + $0x9] sm:$0xf] %vm529, %v1129
      %1135 = vst.msk [vmem:[#allocation5 + $0xd] sm:$0x1] %vm376, 0.0
      %v1136 = vld [vmem:[#allocation5] sm:$0xff]
      %v1137 = vld [vmem:[#allocation5 + $0x8] sm:$0xf]
      %v1138 = vld [vmem:[#allocation5 + $0x1] sm:$0xff]
      %v1139 = vld [vmem:[#allocation5 + $0x9] sm:$0xf]
      %v1140 = vld [vmem:[#allocation5 + $0x2] sm:$0xff]
      %v1141 = vld [vmem:[#allocation5 + $0xa] sm:$0xf]
      %1144 = vrot.lane.b32.xlu0 %v1138, 32
      %v1145 = vpop.permute.xlu0 %1144
      %1146 = vrot.lane.b32.xlu0 %v1139, 32
      %v1147 = vpop.permute.xlu0 %1146
      %1152 = vrot.lane.b32.xlu0 %v1140, 64
      %v1153 = vpop.permute.xlu0 %1152
      %1154 = vrot.lane.b32.xlu0 %v1141, 64
      %v1155 = vpop.permute.xlu0 %1154
      %v1158 = vsel %vm370, %v1136, %v1145
      %v1159 = vsel %vm370, %v1137, %v1147
      %v1160 = vsel %vm423, %v1158, %v1153
      %v1161 = vsel %vm423, %v1159, %v1155
      %v1163 = vsel %vm426, %v1160, 0
      %v1166 = vsel %vm426, %v1161, 0
      %1168 = vmatprep.subr.mxu0 0.0
      %1169 = vmatpush1.msra.mxu0 %v340
      %1170 = vmatprep.subr.mxu0 0.0
      %1171 = vmatpush1.msra.mxu0 %v341
      %1172 = vmatprep.subr.mxu0 0.0
      %1173 = vmatpush1.msra.mxu0 %v342
      %1174 = vmatprep.subr.mxu0 0.0
      %1175 = vmatpush1.msra.mxu0 %v343
      %1176 = vmatprep.subr.mxu0 0.0
      %1177 = vmatpush1.msra.mxu0 %v344
      %1178 = vmatprep.subr.mxu0 0.0
      %1179 = vmatpush1.msra.mxu0 %v345
      %1180 = vmatprep.subr.mxu0 0.0
      %1181 = vmatpush1.msra.mxu0 %v346
      %1182 = vmatprep.subr.mxu0 0.0
      %1183 = vmatpush1.msra.mxu0 %v347
      %1184 = vmatprep.subr.mxu0 0.0
      %1185 = vmatpush1.msra.mxu0 %v348
      %1186 = vmatprep.subr.mxu0 0.0
      %1187 = vmatpush1.msra.mxu0 %v349
      %1188 = vmatprep.subr.mxu0 0.0
      %1189 = vmatpush1.msra.mxu0 %v350
      %1190 = vmatprep.subr.mxu0 0.0
      %1191 = vmatpush1.msra.mxu0 %v351
      %1192 = vmatprep.subr.mxu0 0.0
      %1193 = vmatpush1.msra.mxu0 0.0
      %1194 = vmatprep.subr.mxu0 0.0
      %1195 = vmatpush1.msra.mxu0 0.0
      %1196 = vmatprep.subr.mxu0 0.0
      %1197 = vmatpush1.msra.mxu0 0.0
      %1198 = vmatprep.subr.mxu0 0.0
      %1199 = vmatpush1.msra.mxu0 0.0
      %1200 = vmatprep.subr.mxu0 0.0
      %1201 = vmatpush1.msra.mxu0 0.0
      %1202 = vmatprep.subr.mxu0 0.0
      %1203 = vmatpush1.msra.mxu0 0.0
      %1204 = vmatprep.subr.mxu0 0.0
      %1205 = vmatpush1.msra.mxu0 0.0
      %1206 = vmatprep.subr.mxu0 0.0
      %1207 = vmatpush1.msra.mxu0 0.0
      %1208 = vmatprep.subr.mxu0 0.0
      %1209 = vmatpush1.msra.mxu0 0.0
      %1210 = vmatprep.subr.mxu0 0.0
      %1211 = vmatpush1.msra.mxu0 0.0
      %1212 = vmatprep.subr.mxu0 0.0
      %1213 = vmatpush1.msra.mxu0 0.0
      %1214 = vmatprep.subr.mxu0 0.0
      %1215 = vmatpush1.msra.mxu0 0.0
      %1216 = vmatprep.subr.mxu0 0.0
      %1217 = vmatpush1.msra.mxu0 0.0
      %1218 = vmatprep.subr.mxu0 0.0
      %1219 = vmatpush1.msra.mxu0 0.0
      %1220 = vmatprep.subr.mxu0 0.0
      %1221 = vmatpush1.msra.mxu0 0.0
      %1222 = vmatprep.subr.mxu0 0.0
      %1223 = vmatpush1.msra.mxu0 0.0
      %1224 = vmatprep.subr.mxu0 0.0
      %1225 = vmatpush1.msra.mxu0 0.0
      %1226 = vmatprep.subr.mxu0 0.0
      %1227 = vmatpush1.msra.mxu0 0.0
      %1228 = vmatprep.subr.mxu0 0.0
      %1229 = vmatpush1.msra.mxu0 0.0
      %1230 = vmatprep.subr.mxu0 0.0
      %1231 = vmatpush1.msra.mxu0 0.0
      %1232 = vmatprep.mubr.f32.mxu0 0.0
      %1233 = vmatmul.mubr.f32.gmra.mrb[0].mxu0 %v1163
      %v1234 = vpop.f32.mrb[0].mxu0
      %v1235 = vadd.f32 %v757, %v1234
      %v1236 = vpop.f32.mrb[0].mxu0
      %1237 = vmatprep.mubr.f32.mxu0 0.0
      %1238 = vmatmul.mubr.f32.gmra.mrb[0].mxu0 %v1166
      %v1239 = vpop.f32.mrb[0].mxu0
      %v1240 = vadd.f32 %v757, %v1239
      %v1241 = vpop.f32.mrb[0].mxu0
      %1242 = vdwg.mxu0
      %v1243 = vmax.f32 %v1235, 0.0
      %v1244 = vmax.f32 %v1240, 0.0
      %1245 = vst [vmem:[#allocation6] ss:$2 sm:$0xff] %v1243
      %s1246 = scalar_lea.vmem [#allocation6], 16
      %1247 = vst [vmem:[%s1246] ss:$2 sm:$0xf] %v1244
      %1250 = vrot.lane.b32.xlu0 %v1243, 96
      %v1251 = vpop.permute.xlu0 %1250
      %1252 = vrot.lane.b32.xlu0 %v1244, 96
      %v1253 = vpop.permute.xlu0 %1252
      %1256 = vst [vmem:[%s837] ss:$2 sm:$0xff] %v1251
      %s1257 = scalar_lea.vmem [#allocation6], 17
      %1258 = vst [vmem:[%s1257] ss:$2 sm:$0xf] %v1253
      %v1259 = vld [vmem:[#allocation6] sm:$0xff]
      %v1260 = vld [vmem:[#allocation6 + $0x8] sm:$0xff]
      %v1261 = vld [vmem:[#allocation6 + $0x10] sm:$0x3f]
      %s1262 = sld [smem:[#allocation8 + %s512]]
      %v1263 = vadd.s32 %v516, 16
      %v1264 = vstv %s1262
      %vm1265 = vcmp.ge.s32.totalorder %v516, %v1264
      %vm1266 = vcmp.ge.s32.totalorder %v517, %v1264
      %vm1267 = vcmp.ge.s32.totalorder %v1263, %v1264
      %v1268 = vsel %vm1265, 1, 0
      %v1269 = vsel %vm1266, 1, 0
      %v1270 = vsel %vm1267, 1, 0
      %vm1271 = vcmp.eq.s32.totalorder %v1268, 1
      %vm1272 = vcmp.eq.s32.totalorder %v1269, 1
      %vm1273 = vcmp.eq.s32.totalorder %v1270, 1
      %v1274 = vsel %vm1271, 0.0, %v1259
      %v1275 = vsel %vm1272, 0.0, %v1260
      %v1276 = vsel %vm1273, 0.0, %v1261
      %v1277 = vld [vmem:[#allocation2 + $0x1] sm:$0xff]
      %v1278 = vld [vmem:[#allocation2 + $0x9] sm:$0xff]
      %v1279 = vld [vmem:[#allocation2 + $0x11] sm:$0x3f]
      %1283 = vrot.lane.b32.xlu0 %v1277, 32
      %v1284 = vpop.permute.xlu0 %1283
      %1285 = vrot.lane.b32.xlu0 %v1278, 32
      %v1286 = vpop.permute.xlu0 %1285
      %1287 = vrot.lane.b32.xlu0 %v1279, 32
      %v1288 = vpop.permute.xlu0 %1287
      %v1292 = vsel %vm370, %v1274, %v1284
      %v1293 = vsel %vm370, %v1275, %v1286
      %v1294 = vsel %vm370, %v1276, %v1288
      %v1296 = vsel %vm423, %v1292, 0
      %v1299 = vsel %vm423, %v1293, 0
      %v1302 = vsel %vm423, %v1294, 0
      %1304 = vmatprep.subr.mxu0 0.0
      %1305 = vmatpush1.msra.mxu0 %v352
      %1306 = vmatprep.subr.mxu0 0.0
      %1307 = vmatpush1.msra.mxu0 %v353
      %1308 = vmatprep.subr.mxu0 0.0
      %1309 = vmatpush1.msra.mxu0 %v354
      %1310 = vmatprep.subr.mxu0 0.0
      %1311 = vmatpush1.msra.mxu0 %v355
      %1312 = vmatprep.subr.mxu0 0.0
      %1313 = vmatpush1.msra.mxu0 %v356
      %1314 = vmatprep.subr.mxu0 0.0
      %1315 = vmatpush1.msra.mxu0 %v357
      %1316 = vmatprep.subr.mxu0 0.0
      %1317 = vmatpush1.msra.mxu0 %v358
      %1318 = vmatprep.subr.mxu0 0.0
      %1319 = vmatpush1.msra.mxu0 %v359
      %1320 = vmatprep.subr.mxu0 0.0
      %1321 = vmatpush1.msra.mxu0 0.0
      %1322 = vmatprep.subr.mxu0 0.0
      %1323 = vmatpush1.msra.mxu0 0.0
      %1324 = vmatprep.subr.mxu0 0.0
      %1325 = vmatpush1.msra.mxu0 0.0
      %1326 = vmatprep.subr.mxu0 0.0
      %1327 = vmatpush1.msra.mxu0 0.0
      %1328 = vmatprep.subr.mxu0 0.0
      %1329 = vmatpush1.msra.mxu0 0.0
      %1330 = vmatprep.subr.mxu0 0.0
      %1331 = vmatpush1.msra.mxu0 0.0
      %1332 = vmatprep.subr.mxu0 0.0
      %1333 = vmatpush1.msra.mxu0 0.0
      %1334 = vmatprep.subr.mxu0 0.0
      %1335 = vmatpush1.msra.mxu0 0.0
      %1336 = vmatprep.subr.mxu0 0.0
      %1337 = vmatpush1.msra.mxu0 0.0
      %1338 = vmatprep.subr.mxu0 0.0
      %1339 = vmatpush1.msra.mxu0 0.0
      %1340 = vmatprep.subr.mxu0 0.0
      %1341 = vmatpush1.msra.mxu0 0.0
      %1342 = vmatprep.subr.mxu0 0.0
      %1343 = vmatpush1.msra.mxu0 0.0
      %1344 = vmatprep.subr.mxu0 0.0
      %1345 = vmatpush1.msra.mxu0 0.0
      %1346 = vmatprep.subr.mxu0 0.0
      %1347 = vmatpush1.msra.mxu0 0.0
      %1348 = vmatprep.subr.mxu0 0.0
      %1349 = vmatpush1.msra.mxu0 0.0
      %1350 = vmatprep.subr.mxu0 0.0
      %1351 = vmatpush1.msra.mxu0 0.0
      %1352 = vmatprep.subr.mxu0 0.0
      %1353 = vmatpush1.msra.mxu0 0.0
      %1354 = vmatprep.subr.mxu0 0.0
      %1355 = vmatpush1.msra.mxu0 0.0
      %1356 = vmatprep.subr.mxu0 0.0
      %1357 = vmatpush1.msra.mxu0 0.0
      %1358 = vmatprep.subr.mxu0 0.0
      %1359 = vmatpush1.msra.mxu0 0.0
      %1360 = vmatprep.subr.mxu0 0.0
      %1361 = vmatpush1.msra.mxu0 0.0
      %1362 = vmatprep.subr.mxu0 0.0
      %1363 = vmatpush1.msra.mxu0 0.0
      %1364 = vmatprep.subr.mxu0 0.0
      %1365 = vmatpush1.msra.mxu0 0.0
      %1366 = vmatprep.subr.mxu0 0.0
      %1367 = vmatpush1.msra.mxu0 0.0
      %1368 = vmatprep.mubr.f32.mxu0 0.0
      %1369 = vmatmul.mubr.f32.gmra.mrb[0].mxu0 %v1296
      %v1370 = vpop.f32.mrb[0].mxu0
      %v1371 = vadd.f32 %v856, %v1370
      %v1372 = vpop.f32.mrb[0].mxu0
      %1373 = vmatprep.mubr.f32.mxu0 0.0
      %1374 = vmatmul.mubr.f32.gmra.mrb[0].mxu0 %v1299
      %v1375 = vpop.f32.mrb[0].mxu0
      %v1376 = vadd.f32 %v856, %v1375
      %v1377 = vpop.f32.mrb[0].mxu0
      %1378 = vmatprep.mubr.f32.mxu0 0.0
      %1379 = vmatmul.mubr.f32.gmra.mrb[0].mxu0 %v1302
      %v1380 = vpop.f32.mrb[0].mxu0
      %v1381 = vadd.f32 %v856, %v1380
      %v1382 = vpop.f32.mrb[0].mxu0
      %1383 = vdwg.mxu0
      %1384 = vst.msk [vmem:[%s323] sm:$0xff] %vm370, %v1371
      %1385 = vst.msk [vmem:[%s323 + $0x8] sm:$0xff] %vm370, %v1376
      %1386 = vst.msk [vmem:[%s323 + $0x10] sm:$0x3f] %vm633, %v1381
      %p1387 = scmp.lt.s32.totalorder %s27, 1
      %s1388 = scalar_select %p1387, %s27, 1
      %s1389 = smul.addr %s1388, 4
      %s1390 = scalar_lea.vmem %s8, %s1389
      %p1391 = scmp.lt.s32.totalorder %s27, 1
      %s1392 = scalar_select %p1391, %s27, 1
      %s1393 = smul.addr %s1392, 3
      %s1394 = smul.addr %s1393, 8
      %s1395 = scalar_lea.vmem %s9, %s1394
      // Predicated region
      $region49: #{upsample_downsample_forward.1} parent=47 // pred_check
        %p1396 = pneg %p197
      $region50: #{upsample_downsample_forward.1} parent=47 // pred_check_branch
        %1398 = sbr.rel (%p1396) target = $region52
      $region51: #{upsample_downsample_forward.1} parent=47 // pred_region
        _
      $region52: #{upsample_downsample_forward.1} parent=47 // pred_fallthru
        _
      // Predicated region
      $region53: #{upsample_downsample_forward.1} parent=47 // pred_check
        %p1399 = pneg %p223
      $region54: #{upsample_downsample_forward.1} parent=47 // pred_check_branch
        %1401 = sbr.rel (%p1399) target = $region56
      $region55: #{upsample_downsample_forward.1} parent=47 // pred_region
        _
      $region56: #{upsample_downsample_forward.1} parent=47 // pred_fallthru
        _
    $region48: #{upsample_downsample_forward.1} parent=5 // pred_fallthru
      _
    %p1402 = scmp.le.s32.totalorder 2, %s22
    // Predicated region
    $region57: #{upsample_downsample_forward.1} parent=5 // pred_check
      %p1403 = pneg %p1402
    $region58: #{upsample_downsample_forward.1} parent=5 // pred_check_branch
      %1405 = sbr.rel (%p1403) target = $region60
    $region59: #{upsample_downsample_forward.1} parent=5 // pred_region
      %s1406 = ssub.s32 %s22, 2
      // Predicated region
      $region61: #{upsample_downsample_forward.1} parent=59 // pred_check
        %p1407 = pneg %p203
      $region62: #{upsample_downsample_forward.1} parent=59 // pred_check_branch
        %1409 = sbr.rel (%p1407) target = $region64
      $region63: #{upsample_downsample_forward.1} parent=59 // pred_region
        %p1410 = scmp.lt.s32.totalorder %s28, 1
        %s1411 = scalar_select %p1410, %s28, 1
        %s1412 = smul.addr %s1411, 4
        %s1413 = scalar_lea.vmem %s8, %s1412
      $region64: #{upsample_downsample_forward.1} parent=59 // pred_fallthru
        _
      // Predicated region
      $region65: #{upsample_downsample_forward.1} parent=59 // pred_check
        %p1414 = pneg %p229
      $region66: #{upsample_downsample_forward.1} parent=59 // pred_check_branch
        %1416 = sbr.rel (%p1414) target = $region68
      $region67: #{upsample_downsample_forward.1} parent=59 // pred_region
        %p1417 = scmp.lt.s32.totalorder %s28, 1
        %s1418 = scalar_select %p1417, %s28, 1
        %s1419 = smul.addr %s1418, 3
        %s1420 = smul.addr %s1419, 8
        %s1421 = scalar_lea.vmem %s9, %s1420
      $region68: #{upsample_downsample_forward.1} parent=59 // pred_fallthru
        _
    $region60: #{upsample_downsample_forward.1} parent=5 // pred_fallthru
      _
  $region6: #{upsample_downsample_forward.1} parent=0 // loop_footer
    %s26 = sadd.s32 1, %s22
  $region7: #{upsample_downsample_forward.1} parent=0 // loop_footer_branch
    %21 = sbr.rel target = $region3
  $region8: #{upsample_downsample_forward.1} parent=0 // loop_exit
    _

</llo_original>
